<compile_context>
chip_gen: v5e
topology: v5e:2x2
jax: 0.10.0
libtpu: 0.0.40
codegen_flags: <defaults>
</compile_context>

<pallas_src>
from functools import partial

import jax
import jax.numpy as jnp
from jax.experimental import pallas as pl
from jax.experimental.pallas import tpu as pltpu

EPS = 1e-5


def _linear_attention_kernel(x_ref, wqkv_ref, wout_ref, bout_ref, g_ref, mask_ref,
                             o_ref, *, heads, dim_head, eps):
    hidden = heads * dim_head
    x = x_ref[0]                                   # (C, N) f32, channel-major
    n = x.shape[-1]

    # ---- to_qkv: 1x1 conv (no bias) == one matmul over channels (bf16 MXU) ----
    qkv = jnp.dot(wqkv_ref[...], x.astype(jnp.bfloat16),
                  preferred_element_type=jnp.float32)                  # (3*hidden, N) f32
    q = qkv[:hidden]
    k = qkv[hidden:2 * hidden]
    v = qkv[2 * hidden:]

    # ---- q: segmented softmax over dim_head (per head, per spatial position) ----
    q3 = q.reshape(heads, dim_head, n)
    q3 = jnp.exp(q3 - jnp.max(q3, axis=1, keepdims=True))
    q3 = q3 * pl.reciprocal(jnp.sum(q3, axis=1, keepdims=True), approx=True)
    q = q3.reshape(hidden, n)                                          # (hidden, N) f32

    # ---- k: softmax over the spatial (lane) axis, per (head, d) row ----
    k = jnp.exp(k - jnp.max(k, axis=-1, keepdims=True))
    k = k * pl.reciprocal(jnp.sum(k, axis=-1, keepdims=True), approx=True)

    # ---- context^T for all heads in one (hidden, hidden) MXU matmul.
    #      The resident mask is block-diagonal and already carries scale * 1/n,
    #      so no separate q*scale / v/n elementwise passes are needed. ----
    ctx_t = jax.lax.dot_general(v.astype(jnp.bfloat16), k.astype(jnp.bfloat16),
                                (((1,), (1,)), ((), ())),
                                preferred_element_type=jnp.float32)    # (hidden, hidden)
    ctx_t = ctx_t * mask_ref[...]

    # ---- reassociated output projection: y = (w_out @ ctx^T) @ q  (+ bias) ----
    wctx = jnp.dot(wout_ref[...], ctx_t.astype(jnp.bfloat16),
                   preferred_element_type=jnp.float32)                 # (C, hidden)
    y = jnp.dot(wctx.astype(jnp.bfloat16), q.astype(jnp.bfloat16),
                preferred_element_type=jnp.float32)                    # (C, N)
    y = y + bout_ref[...]

    # ---- channel LayerNorm (biased variance, f32) with gain g ----
    mu = jnp.mean(y, axis=0, keepdims=True)
    var = jnp.mean((y - mu) * (y - mu), axis=0, keepdims=True)
    o_ref[0] = (y - mu) * jax.lax.rsqrt(var + eps) * g_ref[...]


def linear_attention_pallas(x_nchw, params, *, heads=4, dim_head=32):
    B, C, H, W = x_nchw.shape
    N = H * W
    hidden = heads * dim_head
    scale = dim_head ** -0.5
    assert params["w_qkv"].shape == (3 * hidden, C)
    assert params["w_out"].shape == (C, hidden)
    assert params["b_out"].shape == (C, 1)
    assert params["g"].shape == (C, 1)

    x = x_nchw.reshape(B, C, N)                    # channel-major, lane axis = N

    # Resident bf16 weights (halves weight DMA; MXU is bf16-native on all gens).
    w_qkv = params["w_qkv"].astype(jnp.bfloat16)
    w_out = params["w_out"].astype(jnp.bfloat16)

    # Pre-scaled block-diagonal head mask: scale/N on the diagonal blocks, 0 off.
    head_id = jnp.arange(hidden, dtype=jnp.int32) // dim_head
    mask = (head_id[:, None] == head_id[None, :]).astype(jnp.float32) * (scale / N)

    kernel = partial(_linear_attention_kernel, heads=heads, dim_head=dim_head, eps=EPS)

    flops = 2 * B * (N * C * 3 * hidden            # qkv projection
                     + hidden * hidden * N          # context (v @ k^T)
                     + C * hidden * hidden          # w_out @ ctx^T
                     + C * hidden * N)              # (w_out @ ctx^T) @ q
    transcendentals = 2 * B * hidden * N            # exp for q- and k-softmax
    bytes_accessed = (4 * 2 * B * C * N             # x in, y out (f32)
                      + 2 * (3 * hidden * C + C * hidden)   # bf16 weights
                      + 4 * hidden * hidden         # mask
                      + 4 * 2 * C)                  # bias + gain

    out = pl.pallas_call(
        kernel,
        out_shape=jax.ShapeDtypeStruct((B, C, N), jnp.float32),
        grid_spec=pltpu.PrefetchScalarGridSpec(
            num_scalar_prefetch=0,
            grid=(B,),
            in_specs=[
                pl.BlockSpec((1, C, N), lambda b: (b, 0, 0)),          # x (per batch)
                pl.BlockSpec((3 * hidden, C), lambda b: (0, 0)),       # w_qkv (resident)
                pl.BlockSpec((C, hidden), lambda b: (0, 0)),           # w_out (resident)
                pl.BlockSpec((C, 1), lambda b: (0, 0)),                # b_out
                pl.BlockSpec((C, 1), lambda b: (0, 0)),                # g
                pl.BlockSpec((hidden, hidden), lambda b: (0, 0)),      # scaled head mask
            ],
            out_specs=pl.BlockSpec((1, C, N), lambda b: (b, 0, 0)),
        ),
        compiler_params=pltpu.CompilerParams(
            dimension_semantics=("parallel",)),
        cost_estimate=pl.CostEstimate(
            flops=flops,
            transcendentals=transcendentals,
            bytes_accessed=bytes_accessed),
    )(x, w_qkv, w_out, params["b_out"], params["g"], mask)

    return out.reshape(B, C, H, W)


def linear_attention_ref(x_nchw, params, heads, dim_head):
    """Pure-JAX reference matching the PyTorch forward (NCHW in/out)."""
    b, c, h, w = x_nchw.shape
    n = h * w
    hidden = heads * dim_head
    scale = dim_head ** -0.5

    x = x_nchw.reshape(b, c, n)
    qkv = jnp.einsum("oc,bcn->bon", params["w_qkv"], x)
    q, k, v = jnp.split(qkv, 3, axis=1)
    q = q.reshape(b, heads, dim_head, n)
    k = k.reshape(b, heads, dim_head, n)
    v = v.reshape(b, heads, dim_head, n)

    q = jax.nn.softmax(q, axis=-2) * scale
    k = jax.nn.softmax(k, axis=-1)
    v = v / n

    context = jnp.einsum("bhdn,bhen->bhde", k, v)
    out = jnp.einsum("bhde,bhdn->bhen", context, q)
    out = out.reshape(b, hidden, n)

    y = jnp.einsum("oc,bcn->bon", params["w_out"], out) + params["b_out"].reshape(1, c, 1)
    mu = jnp.mean(y, axis=1, keepdims=True)
    var = jnp.mean((y - mu) ** 2, axis=1, keepdims=True)
    y = (y - mu) * jax.lax.rsqrt(var + EPS) * params["g"].reshape(1, c, 1)
    return y.reshape(b, c, h, w)


if __name__ == "__main__":
    # LinearAttention(dim=4, heads=4, dim_head=32) on x of shape (2, 4, 16, 16)
    B, C, H, W = 2, 4, 16, 16
    heads, dim_head = 4, 32
    hidden = heads * dim_head

    key = jax.random.PRNGKey(0)
    kx, k1, k2, k3, k4 = jax.random.split(key, 5)

    x = jax.random.normal(kx, (B, C, H, W), jnp.float32)            # NCHW, like torch

    # Conv2d 1x1 weights flattened: to_qkv.weight (3*hidden, dim, 1, 1) -> (3*hidden, dim),
    # to_out[0].weight (dim, hidden, 1, 1) -> (dim, hidden); LayerNorm gain g -> (dim, 1).
    params = {
        "w_qkv": jax.random.normal(k1, (3 * hidden, C), jnp.float32) / jnp.sqrt(C),
        "w_out": jax.random.normal(k2, (C, hidden), jnp.float32) / jnp.sqrt(hidden),
        "b_out": 0.1 * jax.random.normal(k3, (C, 1), jnp.float32),
        "g": 1.0 + 0.1 * jax.random.normal(k4, (C, 1), jnp.float32),
    }

    out = jax.block_until_ready(
        linear_attention_pallas(x, params, heads=heads, dim_head=dim_head))
    ref = jax.block_until_ready(linear_attention_ref(x, params, heads, dim_head))
    assert out.shape == (B, C, H, W)

    import numpy as np
    np.testing.assert_allclose(np.asarray(out), np.asarray(ref), rtol=2e-2, atol=2e-2)
    print("KERNEL_OK")
</pallas_src>

<mosaic_0001>
module attributes {stable_mosaic.version = 11 : i64} {
  func.func @_linear_attention_kernel(%arg0: i32, %arg1: memref<1x4x256xf32, #tpu.memory_space<vmem>>, %arg2: memref<384x4xbf16, #tpu.memory_space<vmem>>, %arg3: memref<4x128xbf16, #tpu.memory_space<vmem>>, %arg4: memref<4x1xf32, #tpu.memory_space<vmem>>, %arg5: memref<4x1xf32, #tpu.memory_space<vmem>>, %arg6: memref<128x128xf32, #tpu.memory_space<vmem>>, %arg7: memref<1x4x256xf32, #tpu.memory_space<vmem>>) attributes {dimension_semantics = [#tpu.dimension_semantics<parallel>], iteration_bounds = array<i64: 2>, scalar_prefetch = 0 : i64, scratch_operands = 0 : i64, tpu.core_type = #tpu.core_type<tc>, window_params = [{transform_indices = @transform_0, window_bounds = array<i64: 1, 4, 256>}, {pipeline_mode = #tpu.pipeline_mode<synchronous>, transform_indices = @transform_1, window_bounds = array<i64: 384, 4>}, {pipeline_mode = #tpu.pipeline_mode<synchronous>, transform_indices = @transform_2, window_bounds = array<i64: 4, 128>}, {pipeline_mode = #tpu.pipeline_mode<synchronous>, transform_indices = @transform_3, window_bounds = array<i64: 4, 1>}, {pipeline_mode = #tpu.pipeline_mode<synchronous>, transform_indices = @transform_4, window_bounds = array<i64: 4, 1>}, {pipeline_mode = #tpu.pipeline_mode<synchronous>, transform_indices = @transform_5, window_bounds = array<i64: 128, 128>}, {transform_indices = @transform_6, window_bounds = array<i64: 1, 4, 256>}]} {
    %c0 = arith.constant 0 : index
    %c0_0 = arith.constant 0 : index
    %c0_1 = arith.constant 0 : index
    %0 = vector.load %arg1[%c0, %c0_0, %c0_1] : memref<1x4x256xf32, #tpu.memory_space<vmem>>, vector<1x4x256xf32>
    %1 = vector.shape_cast %0 : vector<1x4x256xf32> to vector<4x256xf32>
    %c0_2 = arith.constant 0 : index
    %c0_3 = arith.constant 0 : index
    %2 = vector.load %arg2[%c0_2, %c0_3] : memref<384x4xbf16, #tpu.memory_space<vmem>>, vector<384x4xbf16>
    %3 = arith.truncf %1 : vector<4x256xf32> to vector<4x256xbf16>
    %cst = arith.constant dense<0.000000e+00> : vector<384x256xf32>
    %4 = tpu.matmul %2, %3, %cst {dimension_numbers = #tpu.dot_dimension_numbers<[1], [0], [0], [1], [0, 0, 1, 1], [], []>} : vector<384x4xbf16>, vector<4x256xbf16>, vector<384x256xf32> -> vector<384x256xf32>
    %5 = vector.extract_strided_slice %4 {offsets = [0, 0], sizes = [128, 256], strides = [1, 1]} : vector<384x256xf32> to vector<128x256xf32>
    %6 = vector.extract_strided_slice %4 {offsets = [128, 0], sizes = [128, 256], strides = [1, 1]} : vector<384x256xf32> to vector<128x256xf32>
    %7 = vector.extract_strided_slice %4 {offsets = [256, 0], sizes = [128, 256], strides = [1, 1]} : vector<384x256xf32> to vector<128x256xf32>
    %8 = vector.shape_cast %5 : vector<128x256xf32> to vector<4x32x256xf32>
    %cst_4 = arith.constant dense<0xFF800000> : vector<4x256xf32>
    %9 = vector.multi_reduction <maximumf>, %8, %cst_4 [1] : vector<4x32x256xf32> to vector<4x256xf32>
    %10 = vector.shape_cast %9 : vector<4x256xf32> to vector<4x1x256xf32>
    %11 = vector.broadcast %10 : vector<4x1x256xf32> to vector<4x32x256xf32>
    %12 = arith.subf %8, %11 : vector<4x32x256xf32>
    %13 = math.exp %12 : vector<4x32x256xf32>
    %cst_5 = arith.constant dense<0.000000e+00> : vector<4x256xf32>
    %14 = vector.multi_reduction <add>, %13, %cst_5 [1] : vector<4x32x256xf32> to vector<4x256xf32>
    %15 = vector.shape_cast %14 : vector<4x256xf32> to vector<4x1x256xf32>
    %16 = tpu.reciprocal %15 {approx = true} : vector<4x1x256xf32> -> vector<4x1x256xf32>
    %17 = vector.broadcast %16 : vector<4x1x256xf32> to vector<4x32x256xf32>
    %18 = arith.mulf %13, %17 : vector<4x32x256xf32>
    %19 = vector.shape_cast %18 : vector<4x32x256xf32> to vector<128x256xf32>
    %cst_6 = arith.constant dense<0xFF800000> : vector<128xf32>
    %20 = vector.multi_reduction <maximumf>, %6, %cst_6 [1] : vector<128x256xf32> to vector<128xf32>
    %21 = vector.shape_cast %20 : vector<128xf32> to vector<128x1xf32>
    %22 = vector.broadcast %21 : vector<128x1xf32> to vector<128x256xf32>
    %23 = arith.subf %6, %22 : vector<128x256xf32>
    %24 = math.exp %23 : vector<128x256xf32>
    %cst_7 = arith.constant dense<0.000000e+00> : vector<128xf32>
    %25 = vector.multi_reduction <add>, %24, %cst_7 [1] : vector<128x256xf32> to vector<128xf32>
    %26 = vector.shape_cast %25 : vector<128xf32> to vector<128x1xf32>
    %27 = tpu.reciprocal %26 {approx = true} : vector<128x1xf32> -> vector<128x1xf32>
    %28 = vector.broadcast %27 : vector<128x1xf32> to vector<128x256xf32>
    %29 = arith.mulf %24, %28 : vector<128x256xf32>
    %30 = arith.truncf %7 : vector<128x256xf32> to vector<128x256xbf16>
    %31 = arith.truncf %29 : vector<128x256xf32> to vector<128x256xbf16>
    %cst_8 = arith.constant dense<0.000000e+00> : vector<128x128xf32>
    %32 = tpu.matmul %30, %31, %cst_8 {dimension_numbers = #tpu.dot_dimension_numbers<[1], [1], [0], [0], [0, 0, 1, 0], [], []>} : vector<128x256xbf16>, vector<128x256xbf16>, vector<128x128xf32> -> vector<128x128xf32>
    %c0_9 = arith.constant 0 : index
    %c0_10 = arith.constant 0 : index
    %33 = vector.load %arg6[%c0_9, %c0_10] : memref<128x128xf32, #tpu.memory_space<vmem>>, vector<128x128xf32>
    %34 = arith.mulf %32, %33 : vector<128x128xf32>
    %c0_11 = arith.constant 0 : index
    %c0_12 = arith.constant 0 : index
    %35 = vector.load %arg3[%c0_11, %c0_12] : memref<4x128xbf16, #tpu.memory_space<vmem>>, vector<4x128xbf16>
    %36 = arith.truncf %34 : vector<128x128xf32> to vector<128x128xbf16>
    %cst_13 = arith.constant dense<0.000000e+00> : vector<4x128xf32>
    %37 = tpu.matmul %35, %36, %cst_13 {dimension_numbers = #tpu.dot_dimension_numbers<[1], [0], [0], [1], [0, 0, 1, 1], [], []>} : vector<4x128xbf16>, vector<128x128xbf16>, vector<4x128xf32> -> vector<4x128xf32>
    %38 = arith.truncf %37 : vector<4x128xf32> to vector<4x128xbf16>
    %39 = arith.truncf %19 : vector<128x256xf32> to vector<128x256xbf16>
    %cst_14 = arith.constant dense<0.000000e+00> : vector<4x256xf32>
    %40 = tpu.matmul %38, %39, %cst_14 {dimension_numbers = #tpu.dot_dimension_numbers<[1], [0], [0], [1], [0, 0, 1, 1], [], []>} : vector<4x128xbf16>, vector<128x256xbf16>, vector<4x256xf32> -> vector<4x256xf32>
    %c0_15 = arith.constant 0 : index
    %c0_16 = arith.constant 0 : index
    %41 = vector.load %arg4[%c0_15, %c0_16] : memref<4x1xf32, #tpu.memory_space<vmem>>, vector<4x1xf32>
    %42 = vector.broadcast %41 : vector<4x1xf32> to vector<4x256xf32>
    %43 = arith.addf %40, %42 : vector<4x256xf32>
    %cst_17 = arith.constant dense<0.000000e+00> : vector<256xf32>
    %44 = vector.multi_reduction <add>, %43, %cst_17 [0] : vector<4x256xf32> to vector<256xf32>
    %45 = vector.shape_cast %44 : vector<256xf32> to vector<1x256xf32>
    %cst_18 = arith.constant 4.000000e+00 : f32
    %46 = vector.broadcast %cst_18 : f32 to vector<1x256xf32>
    %47 = arith.divf %45, %46 : vector<1x256xf32>
    %48 = vector.broadcast %47 : vector<1x256xf32> to vector<4x256xf32>
    %49 = arith.subf %43, %48 : vector<4x256xf32>
    %50 = vector.broadcast %47 : vector<1x256xf32> to vector<4x256xf32>
    %51 = arith.subf %43, %50 : vector<4x256xf32>
    %52 = arith.mulf %49, %51 : vector<4x256xf32>
    %cst_19 = arith.constant dense<0.000000e+00> : vector<256xf32>
    %53 = vector.multi_reduction <add>, %52, %cst_19 [0] : vector<4x256xf32> to vector<256xf32>
    %54 = vector.shape_cast %53 : vector<256xf32> to vector<1x256xf32>
    %cst_20 = arith.constant 4.000000e+00 : f32
    %55 = vector.broadcast %cst_20 : f32 to vector<1x256xf32>
    %56 = arith.divf %54, %55 : vector<1x256xf32>
    %57 = vector.broadcast %47 : vector<1x256xf32> to vector<4x256xf32>
    %58 = arith.subf %43, %57 : vector<4x256xf32>
    %cst_21 = arith.constant 9.99999974E-6 : f32
    %59 = vector.broadcast %cst_21 : f32 to vector<1x256xf32>
    %60 = arith.addf %56, %59 : vector<1x256xf32>
    %61 = math.rsqrt %60 : vector<1x256xf32>
    %62 = vector.broadcast %61 : vector<1x256xf32> to vector<4x256xf32>
    %63 = arith.mulf %58, %62 : vector<4x256xf32>
    %c0_22 = arith.constant 0 : index
    %c0_23 = arith.constant 0 : index
    %64 = vector.load %arg5[%c0_22, %c0_23] : memref<4x1xf32, #tpu.memory_space<vmem>>, vector<4x1xf32>
    %65 = vector.broadcast %64 : vector<4x1xf32> to vector<4x256xf32>
    %66 = arith.mulf %63, %65 : vector<4x256xf32>
    %c0_24 = arith.constant 0 : index
    %c0_25 = arith.constant 0 : index
    %c0_26 = arith.constant 0 : index
    %67 = vector.load %arg7[%c0_24, %c0_25, %c0_26] : memref<1x4x256xf32, #tpu.memory_space<vmem>>, vector<1x4x256xf32>
    %68 = vector.shape_cast %67 : vector<1x4x256xf32> to vector<4x256xf32>
    %69 = vector.shape_cast %66 : vector<4x256xf32> to vector<1x4x256xf32>
    tpu.vector_store %arg7[%c0_24, %c0_25, %c0_26], %69 {strides = array<i32>} : memref<1x4x256xf32, #tpu.memory_space<vmem>>, vector<1x4x256xf32>,
    return
  }
  func.func @transform_0(%arg0: i32) -> (i32, i32, i32) {
    %c0_i32 = arith.constant 0 : i32
    %c0_i32_0 = arith.constant 0 : i32
    %c0_i32_1 = arith.constant 0 : i32
    return %arg0, %c0_i32, %c0_i32_0 : i32, i32, i32
  }
  func.func @transform_1(%arg0: i32) -> (i32, i32) {
    %c0_i32 = arith.constant 0 : i32
    %c0_i32_0 = arith.constant 0 : i32
    %c0_i32_1 = arith.constant 0 : i32
    return %c0_i32, %c0_i32_0 : i32, i32
  }
  func.func @transform_2(%arg0: i32) -> (i32, i32) {
    %c0_i32 = arith.constant 0 : i32
    %c0_i32_0 = arith.constant 0 : i32
    %c0_i32_1 = arith.constant 0 : i32
    return %c0_i32, %c0_i32_0 : i32, i32
  }
  func.func @transform_3(%arg0: i32) -> (i32, i32) {
    %c0_i32 = arith.constant 0 : i32
    %c0_i32_0 = arith.constant 0 : i32
    %c0_i32_1 = arith.constant 0 : i32
    return %c0_i32, %c0_i32_0 : i32, i32
  }
  func.func @transform_4(%arg0: i32) -> (i32, i32) {
    %c0_i32 = arith.constant 0 : i32
    %c0_i32_0 = arith.constant 0 : i32
    %c0_i32_1 = arith.constant 0 : i32
    return %c0_i32, %c0_i32_0 : i32, i32
  }
  func.func @transform_5(%arg0: i32) -> (i32, i32) {
    %c0_i32 = arith.constant 0 : i32
    %c0_i32_0 = arith.constant 0 : i32
    %c0_i32_1 = arith.constant 0 : i32
    return %c0_i32, %c0_i32_0 : i32, i32
  }
  func.func @transform_6(%arg0: i32) -> (i32, i32, i32) {
    %c0_i32 = arith.constant 0 : i32
    %c0_i32_0 = arith.constant 0 : i32
    %c0_i32_1 = arith.constant 0 : i32
    return %arg0, %c0_i32, %c0_i32_0 : i32, i32, i32
  }
}

</mosaic_0001>

<llo_original>
// kernel: tpu_custom_call.1
$region0: #{tpu_custom_call.1}
  #allocation0 [shape = 'u32[]', space=smem, size = 0x4, offset = 0x4, fixed_abs, tag = 'smem constant byte address 0x4 - core index']
  #allocation1 [shape = 'u32[72,128]{1,0:T(1,128)}', space=vmem, size = 0x9000, scoped, tag = 'internal scratch']
  %s0 = inlined_call_operand.vmem [shape: f32[2,4,256], index: 0, kind: input, shape index: {}]
  %s1 = inlined_call_operand.vmem [shape: bf16[384,4], index: 1, kind: input, shape index: {}]
  %s2 = inlined_call_operand.vmem [shape: bf16[4,128], index: 2, kind: input, shape index: {}]
  %s3 = inlined_call_operand.vmem [shape: f32[4,1], index: 3, kind: input, shape index: {}]
  %s4 = inlined_call_operand.vmem [shape: f32[4,1], index: 4, kind: input, shape index: {}]
  %s5 = inlined_call_operand.vmem [shape: f32[128,128], index: 5, kind: input, shape index: {}]
  %s6 = inlined_call_operand.hbm [shape: f32[2,4,256], index: 6, kind: output, shape index: {}]
  %s7 = sld [smem:[#allocation0]]
  $region57: #{tpu_custom_call.1} parent=0
    _
  %s9 = ssub.s32 1, %s7
  %s10 = scalar_select 0, %s9, %s7
  $region1: #{tpu_custom_call.1} parent=0
    #allocation2 [shape = 'u8[8192]{0}', space=vmem, size = 0x2000, scoped, tag = 'output window, operand 0']
    #allocation3 [shape = 's32[2]{0}', space=sflag, size = 0x8, scoped, tag = 'scoped memory for tpu_custom_call.1']
    %11 = vsyncpa [#allocation3], 0
    %s12 = scalar_lea.sflag [#allocation3], 1
    %13 = vsyncpa %s12, 0
    loop: start=0, step=1, limit=4
    $region2: #{tpu_custom_call.1} parent=1 // loop_pre_header
      _
    $region3: #{tpu_custom_call.1} parent=1 // loop_header
      %s15 = sphi 0, %s19
      %p16 = scmp.ge.s32.totalorder %s15, 4
      %s25 = sphi 0, %s27
      %s28 = sphi 0, %s25
      %s29 = sphi 0, %s28
      %s45 = sphi 0, %s29
      %s49 = sphi 0, %s49
      %s51 = sphi 0, %s49
      %s52 = sphi 0, %s51
      %s66 = sphi 0, %s52
      %s70 = sphi 0, %s70
      %s72 = sphi 0, %s70
      %s73 = sphi 0, %s72
      %s87 = sphi 0, %s73
      %s91 = sphi 0, %s91
      %s93 = sphi 0, %s91
      %s94 = sphi 0, %s93
      %s108 = sphi 0, %s94
      %s112 = sphi 0, %s112
      %s114 = sphi 0, %s112
      %s115 = sphi 0, %s114
      %s129 = sphi 0, %s115
      %s133 = sphi 0, %s133
      %s135 = sphi 0, %s133
      %s136 = sphi 0, %s135
      %s150 = sphi 0, %s136
      %s156 = sphi 0, %s158
      %s159 = sphi 0, %s156
      %s160 = sphi 0, %s159
      %s176 = sphi 0, %s160
    $region4: #{tpu_custom_call.1} parent=1 // loop_header_branch
      %18 = sbr.rel (%p16) target = $region8
    $region5: #{tpu_custom_call.1} parent=1 // loop_body
      %s20 = ssub.s32 %s15, 1
      %s21 = ssub.s32 %s15, 2
      %s22 = sadd.s32 %s15, 1
      %s23 = ssub.s32 %s15, %s22
      %p24 = scmp.eq.s32.totalorder %s23, 0
      %s26 = sadd.s32 %s25, 1
      %s27 = scalar_select %p24, %s25, %s26
      %p30 = pneg %p24
      %p31 = scmp.eq.s32.totalorder %s15, 1
      %p32 = por %p30, %p31
      %p33 = scmp.ne.s32.totalorder %s25, %s28
      %p34 = scmp.eq.s32.totalorder %s15, 0
      %p35 = por %p33, %p34
      %p36 = scmp.ne.s32.totalorder %s25, %s28
      %p37 = scmp.eq.s32.totalorder %s20, 1
      %p38 = por %p36, %p37
      %p39 = scmp.ne.s32.totalorder %s28, %s29
      %p40 = scmp.eq.s32.totalorder %s20, 0
      %p41 = por %p39, %p40
      %p42 = scmp.ne.s32.totalorder %s28, %s29
      %p43 = scmp.eq.s32.totalorder %s21, 1
      %p44 = por %p42, %p43
      %p46 = scmp.ne.s32.totalorder %s29, %s45
      %p47 = scmp.eq.s32.totalorder %s21, 0
      %p48 = por %p46, %p47
      %s50 = sadd.s32 %s49, 1
      %p53 = scmp.eq.s32.totalorder %s15, 1
      %p54 = scmp.ne.s32.totalorder %s49, %s51
      %p55 = scmp.eq.s32.totalorder %s15, 0
      %p56 = por %p54, %p55
      %p57 = scmp.ne.s32.totalorder %s49, %s51
      %p58 = scmp.eq.s32.totalorder %s20, 1
      %p59 = por %p57, %p58
      %p60 = scmp.ne.s32.totalorder %s51, %s52
      %p61 = scmp.eq.s32.totalorder %s20, 0
      %p62 = por %p60, %p61
      %p63 = scmp.ne.s32.totalorder %s51, %s52
      %p64 = scmp.eq.s32.totalorder %s21, 1
      %p65 = por %p63, %p64
      %p67 = scmp.ne.s32.totalorder %s52, %s66
      %p68 = scmp.eq.s32.totalorder %s21, 0
      %p69 = por %p67, %p68
      %s71 = sadd.s32 %s70, 1
      %p74 = scmp.eq.s32.totalorder %s15, 1
      %p75 = scmp.ne.s32.totalorder %s70, %s72
      %p76 = scmp.eq.s32.totalorder %s15, 0
      %p77 = por %p75, %p76
      %p78 = scmp.ne.s32.totalorder %s70, %s72
      %p79 = scmp.eq.s32.totalorder %s20, 1
      %p80 = por %p78, %p79
      %p81 = scmp.ne.s32.totalorder %s72, %s73
      %p82 = scmp.eq.s32.totalorder %s20, 0
      %p83 = por %p81, %p82
      %p84 = scmp.ne.s32.totalorder %s72, %s73
      %p85 = scmp.eq.s32.totalorder %s21, 1
      %p86 = por %p84, %p85
      %p88 = scmp.ne.s32.totalorder %s73, %s87
      %p89 = scmp.eq.s32.totalorder %s21, 0
      %p90 = por %p88, %p89
      %s92 = sadd.s32 %s91, 1
      %p95 = scmp.eq.s32.totalorder %s15, 1
      %p96 = scmp.ne.s32.totalorder %s91, %s93
      %p97 = scmp.eq.s32.totalorder %s15, 0
      %p98 = por %p96, %p97
      %p99 = scmp.ne.s32.totalorder %s91, %s93
      %p100 = scmp.eq.s32.totalorder %s20, 1
      %p101 = por %p99, %p100
      %p102 = scmp.ne.s32.totalorder %s93, %s94
      %p103 = scmp.eq.s32.totalorder %s20, 0
      %p104 = por %p102, %p103
      %p105 = scmp.ne.s32.totalorder %s93, %s94
      %p106 = scmp.eq.s32.totalorder %s21, 1
      %p107 = por %p105, %p106
      %p109 = scmp.ne.s32.totalorder %s94, %s108
      %p110 = scmp.eq.s32.totalorder %s21, 0
      %p111 = por %p109, %p110
      %s113 = sadd.s32 %s112, 1
      %p116 = scmp.eq.s32.totalorder %s15, 1
      %p117 = scmp.ne.s32.totalorder %s112, %s114
      %p118 = scmp.eq.s32.totalorder %s15, 0
      %p119 = por %p117, %p118
      %p120 = scmp.ne.s32.totalorder %s112, %s114
      %p121 = scmp.eq.s32.totalorder %s20, 1
      %p122 = por %p120, %p121
      %p123 = scmp.ne.s32.totalorder %s114, %s115
      %p124 = scmp.eq.s32.totalorder %s20, 0
      %p125 = por %p123, %p124
      %p126 = scmp.ne.s32.totalorder %s114, %s115
      %p127 = scmp.eq.s32.totalorder %s21, 1
      %p128 = por %p126, %p127
      %p130 = scmp.ne.s32.totalorder %s115, %s129
      %p131 = scmp.eq.s32.totalorder %s21, 0
      %p132 = por %p130, %p131
      %s134 = sadd.s32 %s133, 1
      %p137 = scmp.eq.s32.totalorder %s15, 1
      %p138 = scmp.ne.s32.totalorder %s133, %s135
      %p139 = scmp.eq.s32.totalorder %s15, 0
      %p140 = por %p138, %p139
      %p141 = scmp.ne.s32.totalorder %s133, %s135
      %p142 = scmp.eq.s32.totalorder %s20, 1
      %p143 = por %p141, %p142
      %p144 = scmp.ne.s32.totalorder %s135, %s136
      %p145 = scmp.eq.s32.totalorder %s20, 0
      %p146 = por %p144, %p145
      %p147 = scmp.ne.s32.totalorder %s135, %s136
      %p148 = scmp.eq.s32.totalorder %s21, 1
      %p149 = por %p147, %p148
      %p151 = scmp.ne.s32.totalorder %s136, %s150
      %p152 = scmp.eq.s32.totalorder %s21, 0
      %p153 = por %p151, %p152
      %s154 = ssub.s32 %s15, %s22
      %p155 = scmp.eq.s32.totalorder %s154, 0
      %s157 = sadd.s32 %s156, 1
      %s158 = scalar_select %p155, %s156, %s157
      %p161 = pneg %p155
      %p162 = scmp.eq.s32.totalorder %s15, 1
      %p163 = por %p161, %p162
      %p164 = scmp.ne.s32.totalorder %s156, %s159
      %p165 = scmp.eq.s32.totalorder %s15, 0
      %p166 = por %p164, %p165
      %p167 = scmp.ne.s32.totalorder %s156, %s159
      %p168 = scmp.eq.s32.totalorder %s20, 1
      %p169 = por %p167, %p168
      %p170 = scmp.ne.s32.totalorder %s159, %s160
      %p171 = scmp.eq.s32.totalorder %s20, 0
      %p172 = por %p170, %p171
      %p173 = scmp.ne.s32.totalorder %s159, %s160
      %p174 = scmp.eq.s32.totalorder %s21, 1
      %p175 = por %p173, %p174
      %p177 = scmp.ne.s32.totalorder %s160, %s176
      %p178 = scmp.eq.s32.totalorder %s21, 0
      %p179 = por %p177, %p178
      %p180 = scmp.le.s32.totalorder 1, %s15
      %p181 = scmp.lt.s32.totalorder %s15, 3
      %p182 = pnand %p180, %p181
      %p183 = pneg %p182
      // Predicated region
      $region9: #{tpu_custom_call.1} parent=5 // pred_check
        _
      $region10: #{tpu_custom_call.1} parent=5 // pred_check_branch
        %185 = sbr.rel (%p182) target = $region12
      $region11: #{tpu_custom_call.1} parent=5 // pred_region
        %s186 = ssub.s32 %s15, 1
        // Predicated region
        $region13: #{tpu_custom_call.1} parent=11 // pred_check
          %p187 = pneg %p62
        $region14: #{tpu_custom_call.1} parent=11 // pred_check_branch
          %189 = sbr.rel (%p187) target = $region16
        $region15: #{tpu_custom_call.1} parent=11 // pred_region
          _
        $region16: #{tpu_custom_call.1} parent=11 // pred_fallthru
          _
        // Predicated region
        $region17: #{tpu_custom_call.1} parent=11 // pred_check
          %p190 = pneg %p83
        $region18: #{tpu_custom_call.1} parent=11 // pred_check_branch
          %192 = sbr.rel (%p190) target = $region20
        $region19: #{tpu_custom_call.1} parent=11 // pred_region
          _
        $region20: #{tpu_custom_call.1} parent=11 // pred_fallthru
          _
        // Predicated region
        $region21: #{tpu_custom_call.1} parent=11 // pred_check
          %p193 = pneg %p104
        $region22: #{tpu_custom_call.1} parent=11 // pred_check_branch
          %195 = sbr.rel (%p193) target = $region24
        $region23: #{tpu_custom_call.1} parent=11 // pred_region
          _
        $region24: #{tpu_custom_call.1} parent=11 // pred_fallthru
          _
        // Predicated region
        $region25: #{tpu_custom_call.1} parent=11 // pred_check
          %p196 = pneg %p125
        $region26: #{tpu_custom_call.1} parent=11 // pred_check_branch
          %198 = sbr.rel (%p196) target = $region28
        $region27: #{tpu_custom_call.1} parent=11 // pred_region
          _
        $region28: #{tpu_custom_call.1} parent=11 // pred_fallthru
          _
        // Predicated region
        $region29: #{tpu_custom_call.1} parent=11 // pred_check
          %p199 = pneg %p146
        $region30: #{tpu_custom_call.1} parent=11 // pred_check_branch
          %201 = sbr.rel (%p199) target = $region32
        $region31: #{tpu_custom_call.1} parent=11 // pred_region
          _
        $region32: #{tpu_custom_call.1} parent=11 // pred_fallthru
          _
      $region12: #{tpu_custom_call.1} parent=5 // pred_fallthru
        _
      %p202 = scmp.lt.s32.totalorder %s15, 2
      // Predicated region
      $region33: #{tpu_custom_call.1} parent=5 // pred_check
        %p203 = pneg %p202
      $region34: #{tpu_custom_call.1} parent=5 // pred_check_branch
        %205 = sbr.rel (%p203) target = $region36
      $region35: #{tpu_custom_call.1} parent=5 // pred_region
        // Predicated region
        $region37: #{tpu_custom_call.1} parent=35 // pred_check
          %p206 = pneg %p35
        $region38: #{tpu_custom_call.1} parent=35 // pred_check_branch
          %208 = sbr.rel (%p206) target = $region40
        $region39: #{tpu_custom_call.1} parent=35 // pred_region
          %p209 = scmp.lt.s32.totalorder %s15, 1
          %s210 = scalar_select %p209, %s15, 1
          %s211 = smul.addr %s210, 2
          %s212 = smul.addr %s211, 4
          %s213 = scalar_lea.vmem %s0, %s212
        $region40: #{tpu_custom_call.1} parent=35 // pred_fallthru
          _
      $region36: #{tpu_custom_call.1} parent=5 // pred_fallthru
        _
      %p214 = scmp.le.s32.totalorder 1, %s15
      %p215 = scmp.lt.s32.totalorder %s15, 3
      %p216 = pnand %p214, %p215
      %p217 = pneg %p216
      // Predicated region
      $region41: #{tpu_custom_call.1} parent=5 // pred_check
        _
      $region42: #{tpu_custom_call.1} parent=5 // pred_check_branch
        %219 = sbr.rel (%p216) target = $region44
      $region43: #{tpu_custom_call.1} parent=5 // pred_region
        %s220 = ssub.s32 %s15, 1
        %p221 = scmp.lt.s32.totalorder %s20, 1
        %s222 = scalar_select %p221, %s20, 1
        %s223 = smul.addr %s222, 2
        %s224 = smul.addr %s223, 4
        %s225 = scalar_lea.vmem %s0, %s224
        %p226 = pneg %p41
        %p227 = pneg %p38
        %p228 = pneg %p62
        %p229 = pneg %p59
        %p230 = pneg %p83
        %p231 = pneg %p80
        %p232 = pneg %p104
        %p233 = pneg %p101
        %p234 = pneg %p125
        %p235 = pneg %p122
        %p236 = pneg %p146
        %p237 = pneg %p143
        %p238 = pneg %p172
        %p239 = pneg %p169
        %s240 = sand.u32 %s159, 1
        %s241 = scalar_lea.sflag [#allocation3], %s240
        %s242 = sand.u32 %s159, 1
        %s243 = smul.addr %s242, 8
        %s244 = scalar_lea.vmem [#allocation2], %s243
        %p245 = scmp.lt.s32.totalorder %s20, 1
        %s246 = scalar_select %p245, %s20, 1
        %s247 = smul.addr %s246, 2
        %s248 = smul.addr %s247, 4
        %s249 = scalar_lea.vmem %s0, %s248
        %v251 = vld [vmem:[%s249] sm:$0xff]
        %v252 = vld [vmem:[%s1] sm:$0xf]
        %v253 = vld [vmem:[%s1 + $0x4] sm:$0xf]
        %v254 = vld [vmem:[%s1 + $0x8] sm:$0xf]
        %v255 = vld [vmem:[%s1 + $0xc] sm:$0xf]
        %v256 = vld [vmem:[%s1 + $0x10] sm:$0xf]
        %v257 = vld [vmem:[%s1 + $0x14] sm:$0xf]
        %v258 = vld [vmem:[%s1 + $0x18] sm:$0xf]
        %v259 = vld [vmem:[%s1 + $0x1c] sm:$0xf]
        %v260 = vld [vmem:[%s1 + $0x20] sm:$0xf]
        %v261 = vld [vmem:[%s1 + $0x24] sm:$0xf]
        %v262 = vld [vmem:[%s1 + $0x28] sm:$0xf]
        %v263 = vld [vmem:[%s1 + $0x2c] sm:$0xf]
        %v264 = vld [vmem:[%s1 + $0x30] sm:$0xf]
        %v265 = vld [vmem:[%s1 + $0x34] sm:$0xf]
        %v266 = vld [vmem:[%s1 + $0x38] sm:$0xf]
        %v267 = vld [vmem:[%s1 + $0x3c] sm:$0xf]
        %v268 = vld [vmem:[%s1 + $0x40] sm:$0xf]
        %v269 = vld [vmem:[%s1 + $0x44] sm:$0xf]
        %v270 = vld [vmem:[%s1 + $0x48] sm:$0xf]
        %v271 = vld [vmem:[%s1 + $0x4c] sm:$0xf]
        %v272 = vld [vmem:[%s1 + $0x50] sm:$0xf]
        %v273 = vld [vmem:[%s1 + $0x54] sm:$0xf]
        %v274 = vld [vmem:[%s1 + $0x58] sm:$0xf]
        %v275 = vld [vmem:[%s1 + $0x5c] sm:$0xf]
        %v276 = vld [vmem:[%s1 + $0x60] sm:$0xf]
        %v277 = vld [vmem:[%s1 + $0x64] sm:$0xf]
        %v278 = vld [vmem:[%s1 + $0x68] sm:$0xf]
        %v279 = vld [vmem:[%s1 + $0x6c] sm:$0xf]
        %v280 = vld [vmem:[%s1 + $0x70] sm:$0xf]
        %v281 = vld [vmem:[%s1 + $0x74] sm:$0xf]
        %v282 = vld [vmem:[%s1 + $0x78] sm:$0xf]
        %v283 = vld [vmem:[%s1 + $0x7c] sm:$0xf]
        %v284 = vld [vmem:[%s1 + $0x80] sm:$0xf]
        %v285 = vld [vmem:[%s1 + $0x84] sm:$0xf]
        %v286 = vld [vmem:[%s1 + $0x88] sm:$0xf]
        %v287 = vld [vmem:[%s1 + $0x8c] sm:$0xf]
        %v288 = vld [vmem:[%s1 + $0x90] sm:$0xf]
        %v289 = vld [vmem:[%s1 + $0x94] sm:$0xf]
        %v290 = vld [vmem:[%s1 + $0x98] sm:$0xf]
        %v291 = vld [vmem:[%s1 + $0x9c] sm:$0xf]
        %v292 = vld [vmem:[%s1 + $0xa0] sm:$0xf]
        %v293 = vld [vmem:[%s1 + $0xa4] sm:$0xf]
        %v294 = vld [vmem:[%s1 + $0xa8] sm:$0xf]
        %v295 = vld [vmem:[%s1 + $0xac] sm:$0xf]
        %v296 = vld [vmem:[%s1 + $0xb0] sm:$0xf]
        %v297 = vld [vmem:[%s1 + $0xb4] sm:$0xf]
        %v298 = vld [vmem:[%s1 + $0xb8] sm:$0xf]
        %v299 = vld [vmem:[%s1 + $0xbc] sm:$0xf]
        %301 = vst [vmem:[#allocation1] ss:$2 sm:$0xff] %v251
        %v302 = vld.sshfl [vmem:[#allocation1] sm:$0xff pattern:$0x75316420]
        %v303 = vld.sshfl [vmem:[#allocation1 + $0x8] sm:$0xff pattern:$0x75316420]
        %v306 = vpack.c.bf16 %v302, %v302
        %v307 = vpack.c.bf16 %v303, %v303
        %v356 = vunpack.c.l.b16 %v252
        %v357 = vunpack.c.l.b16 %v253
        %v358 = vunpack.c.l.b16 %v254
        %v359 = vunpack.c.l.b16 %v255
        %v360 = vunpack.c.l.b16 %v256
        %v361 = vunpack.c.l.b16 %v257
        %v362 = vunpack.c.l.b16 %v258
        %v363 = vunpack.c.l.b16 %v259
        %v364 = vunpack.c.l.b16 %v260
        %v365 = vunpack.c.l.b16 %v261
        %v366 = vunpack.c.l.b16 %v262
        %v367 = vunpack.c.l.b16 %v263
        %v368 = vunpack.c.l.b16 %v264
        %v369 = vunpack.c.l.b16 %v265
        %v370 = vunpack.c.l.b16 %v266
        %v371 = vunpack.c.l.b16 %v267
        %v372 = vunpack.c.l.b16 %v268
        %v373 = vunpack.c.l.b16 %v269
        %v374 = vunpack.c.l.b16 %v270
        %v375 = vunpack.c.l.b16 %v271
        %v376 = vunpack.c.l.b16 %v272
        %v377 = vunpack.c.l.b16 %v273
        %v378 = vunpack.c.l.b16 %v274
        %v379 = vunpack.c.l.b16 %v275
        %v380 = vunpack.c.l.b16 %v276
        %v381 = vunpack.c.l.b16 %v277
        %v382 = vunpack.c.l.b16 %v278
        %v383 = vunpack.c.l.b16 %v279
        %v384 = vunpack.c.l.b16 %v280
        %v385 = vunpack.c.l.b16 %v281
        %v386 = vunpack.c.l.b16 %v282
        %v387 = vunpack.c.l.b16 %v283
        %v388 = vunpack.c.l.b16 %v284
        %v389 = vunpack.c.l.b16 %v285
        %v390 = vunpack.c.l.b16 %v286
        %v391 = vunpack.c.l.b16 %v287
        %v392 = vunpack.c.l.b16 %v288
        %v393 = vunpack.c.l.b16 %v289
        %v394 = vunpack.c.l.b16 %v290
        %v395 = vunpack.c.l.b16 %v291
        %v396 = vunpack.c.l.b16 %v292
        %v397 = vunpack.c.l.b16 %v293
        %v398 = vunpack.c.l.b16 %v294
        %v399 = vunpack.c.l.b16 %v295
        %v400 = vunpack.c.l.b16 %v296
        %v401 = vunpack.c.l.b16 %v297
        %v402 = vunpack.c.l.b16 %v298
        %v403 = vunpack.c.l.b16 %v299
        %v404 = vpack.c.b16 %v357, %v356
        %v405 = vpack.c.b16 %v359, %v358
        %v406 = vpack.c.b16 %v361, %v360
        %v407 = vpack.c.b16 %v363, %v362
        %v408 = vpack.c.b16 %v365, %v364
        %v409 = vpack.c.b16 %v367, %v366
        %v410 = vpack.c.b16 %v369, %v368
        %v411 = vpack.c.b16 %v371, %v370
        %v412 = vpack.c.b16 %v373, %v372
        %v413 = vpack.c.b16 %v375, %v374
        %v414 = vpack.c.b16 %v377, %v376
        %v415 = vpack.c.b16 %v379, %v378
        %v416 = vpack.c.b16 %v381, %v380
        %v417 = vpack.c.b16 %v383, %v382
        %v418 = vpack.c.b16 %v385, %v384
        %v419 = vpack.c.b16 %v387, %v386
        %v420 = vpack.c.b16 %v389, %v388
        %v421 = vpack.c.b16 %v391, %v390
        %v422 = vpack.c.b16 %v393, %v392
        %v423 = vpack.c.b16 %v395, %v394
        %v424 = vpack.c.b16 %v397, %v396
        %v425 = vpack.c.b16 %v399, %v398
        %v426 = vpack.c.b16 %v401, %v400
        %v427 = vpack.c.b16 %v403, %v402
        %vm428 = vcmask 31744
        %v430 = vsel %vm428, %v404, 0
        %v433 = vsel %vm428, %v405, 0
        %v436 = vsel %vm428, %v406, 0
        %v439 = vsel %vm428, %v407, 0
        %v442 = vsel %vm428, %v408, 0
        %v445 = vsel %vm428, %v409, 0
        %v448 = vsel %vm428, %v410, 0
        %v451 = vsel %vm428, %v411, 0
        %v454 = vsel %vm428, %v412, 0
        %v457 = vsel %vm428, %v413, 0
        %v460 = vsel %vm428, %v414, 0
        %v463 = vsel %vm428, %v415, 0
        %v466 = vsel %vm428, %v416, 0
        %v469 = vsel %vm428, %v417, 0
        %v472 = vsel %vm428, %v418, 0
        %v475 = vsel %vm428, %v419, 0
        %v478 = vsel %vm428, %v420, 0
        %v481 = vsel %vm428, %v421, 0
        %v484 = vsel %vm428, %v422, 0
        %v487 = vsel %vm428, %v423, 0
        %v490 = vsel %vm428, %v424, 0
        %v493 = vsel %vm428, %v425, 0
        %v496 = vsel %vm428, %v426, 0
        %v499 = vsel %vm428, %v427, 0
        %vm501 = vcmask 1041408
        %v503 = vsel %vm501, %v306, 0
        %v506 = vsel %vm501, %v307, 0
        %508 = vmatpush.bf16.msra.mxu0 0
        %509 = vmatpush.bf16.msra.mxu0 0
        %510 = vmatpush.bf16.msra.mxu0 0
        %511 = vmatpush.bf16.msra.mxu0 0
        %512 = vmatpush.bf16.msra.mxu0 0
        %513 = vmatpush.bf16.msra.mxu0 0
        %514 = vmatpush.bf16.msra.mxu0 0
        %515 = vmatpush.bf16.msra.mxu0 %v503
        %516 = vmatmul.bf16.gmra.mxu0 %v430
        %v517 = vpop.f32.mrf.mxu0
        %v518 = vadd.f32 0.0, %v517
        %v519 = vpop.f32.mrf.mxu0
        %v520 = vadd.f32 0.0, %v519
        %521 = vmatmul.bf16.gmra.mxu0 %v433
        %v522 = vpop.f32.mrf.mxu0
        %v523 = vadd.f32 0.0, %v522
        %v524 = vpop.f32.mrf.mxu0
        %v525 = vadd.f32 0.0, %v524
        %526 = vmatmul.bf16.gmra.mxu0 %v436
        %v527 = vpop.f32.mrf.mxu0
        %v528 = vadd.f32 0.0, %v527
        %v529 = vpop.f32.mrf.mxu0
        %v530 = vadd.f32 0.0, %v529
        %531 = vmatmul.bf16.gmra.mxu0 %v439
        %v532 = vpop.f32.mrf.mxu0
        %v533 = vadd.f32 0.0, %v532
        %v534 = vpop.f32.mrf.mxu0
        %v535 = vadd.f32 0.0, %v534
        %536 = vmatmul.bf16.gmra.mxu0 %v442
        %v537 = vpop.f32.mrf.mxu0
        %v538 = vadd.f32 0.0, %v537
        %v539 = vpop.f32.mrf.mxu0
        %v540 = vadd.f32 0.0, %v539
        %541 = vmatmul.bf16.gmra.mxu0 %v445
        %v542 = vpop.f32.mrf.mxu0
        %v543 = vadd.f32 0.0, %v542
        %v544 = vpop.f32.mrf.mxu0
        %v545 = vadd.f32 0.0, %v544
        %546 = vmatmul.bf16.gmra.mxu0 %v448
        %v547 = vpop.f32.mrf.mxu0
        %v548 = vadd.f32 0.0, %v547
        %v549 = vpop.f32.mrf.mxu0
        %v550 = vadd.f32 0.0, %v549
        %551 = vmatmul.bf16.gmra.mxu0 %v451
        %v552 = vpop.f32.mrf.mxu0
        %v553 = vadd.f32 0.0, %v552
        %v554 = vpop.f32.mrf.mxu0
        %v555 = vadd.f32 0.0, %v554
        %556 = vmatmul.bf16.gmra.mxu0 %v454
        %v557 = vpop.f32.mrf.mxu0
        %v558 = vadd.f32 0.0, %v557
        %v559 = vpop.f32.mrf.mxu0
        %v560 = vadd.f32 0.0, %v559
        %561 = vmatmul.bf16.gmra.mxu0 %v457
        %v562 = vpop.f32.mrf.mxu0
        %v563 = vadd.f32 0.0, %v562
        %v564 = vpop.f32.mrf.mxu0
        %v565 = vadd.f32 0.0, %v564
        %566 = vmatmul.bf16.gmra.mxu0 %v460
        %v567 = vpop.f32.mrf.mxu0
        %v568 = vadd.f32 0.0, %v567
        %v569 = vpop.f32.mrf.mxu0
        %v570 = vadd.f32 0.0, %v569
        %571 = vmatmul.bf16.gmra.mxu0 %v463
        %v572 = vpop.f32.mrf.mxu0
        %v573 = vadd.f32 0.0, %v572
        %v574 = vpop.f32.mrf.mxu0
        %v575 = vadd.f32 0.0, %v574
        %576 = vmatmul.bf16.gmra.mxu0 %v466
        %v577 = vpop.f32.mrf.mxu0
        %v578 = vadd.f32 0.0, %v577
        %v579 = vpop.f32.mrf.mxu0
        %v580 = vadd.f32 0.0, %v579
        %581 = vmatmul.bf16.gmra.mxu0 %v469
        %v582 = vpop.f32.mrf.mxu0
        %v583 = vadd.f32 0.0, %v582
        %v584 = vpop.f32.mrf.mxu0
        %v585 = vadd.f32 0.0, %v584
        %586 = vmatmul.bf16.gmra.mxu0 %v472
        %v587 = vpop.f32.mrf.mxu0
        %v588 = vadd.f32 0.0, %v587
        %v589 = vpop.f32.mrf.mxu0
        %v590 = vadd.f32 0.0, %v589
        %591 = vmatmul.bf16.gmra.mxu0 %v475
        %v592 = vpop.f32.mrf.mxu0
        %v593 = vadd.f32 0.0, %v592
        %v594 = vpop.f32.mrf.mxu0
        %v595 = vadd.f32 0.0, %v594
        %596 = vmatmul.bf16.gmra.mxu0 %v478
        %v597 = vpop.f32.mrf.mxu0
        %v598 = vadd.f32 0.0, %v597
        %v599 = vpop.f32.mrf.mxu0
        %v600 = vadd.f32 0.0, %v599
        %601 = vmatmul.bf16.gmra.mxu0 %v481
        %v602 = vpop.f32.mrf.mxu0
        %v603 = vadd.f32 0.0, %v602
        %v604 = vpop.f32.mrf.mxu0
        %v605 = vadd.f32 0.0, %v604
        %606 = vmatmul.bf16.gmra.mxu0 %v484
        %v607 = vpop.f32.mrf.mxu0
        %v608 = vadd.f32 0.0, %v607
        %v609 = vpop.f32.mrf.mxu0
        %v610 = vadd.f32 0.0, %v609
        %611 = vmatmul.bf16.gmra.mxu0 %v487
        %v612 = vpop.f32.mrf.mxu0
        %v613 = vadd.f32 0.0, %v612
        %v614 = vpop.f32.mrf.mxu0
        %v615 = vadd.f32 0.0, %v614
        %616 = vmatmul.bf16.gmra.mxu0 %v490
        %v617 = vpop.f32.mrf.mxu0
        %v618 = vadd.f32 0.0, %v617
        %v619 = vpop.f32.mrf.mxu0
        %v620 = vadd.f32 0.0, %v619
        %621 = vmatmul.bf16.gmra.mxu0 %v493
        %v622 = vpop.f32.mrf.mxu0
        %v623 = vadd.f32 0.0, %v622
        %v624 = vpop.f32.mrf.mxu0
        %v625 = vadd.f32 0.0, %v624
        %626 = vmatmul.bf16.gmra.mxu0 %v496
        %v627 = vpop.f32.mrf.mxu0
        %v628 = vadd.f32 0.0, %v627
        %v629 = vpop.f32.mrf.mxu0
        %v630 = vadd.f32 0.0, %v629
        %631 = vmatmul.bf16.gmra.mxu0 %v499
        %v632 = vpop.f32.mrf.mxu0
        %v633 = vadd.f32 0.0, %v632
        %v634 = vpop.f32.mrf.mxu0
        %v635 = vadd.f32 0.0, %v634
        %636 = vdwg.mxu0
        %637 = vmatpush.bf16.msra.mxu0 0
        %638 = vmatpush.bf16.msra.mxu0 0
        %639 = vmatpush.bf16.msra.mxu0 0
        %640 = vmatpush.bf16.msra.mxu0 0
        %641 = vmatpush.bf16.msra.mxu0 0
        %642 = vmatpush.bf16.msra.mxu0 0
        %643 = vmatpush.bf16.msra.mxu0 0
        %644 = vmatpush.bf16.msra.mxu0 %v506
        %645 = vmatmul.bf16.gmra.mxu0 %v430
        %v646 = vpop.f32.mrf.mxu0
        %v647 = vadd.f32 0.0, %v646
        %v648 = vpop.f32.mrf.mxu0
        %v649 = vadd.f32 0.0, %v648
        %650 = vmatmul.bf16.gmra.mxu0 %v433
        %v651 = vpop.f32.mrf.mxu0
        %v652 = vadd.f32 0.0, %v651
        %v653 = vpop.f32.mrf.mxu0
        %v654 = vadd.f32 0.0, %v653
        %655 = vmatmul.bf16.gmra.mxu0 %v436
        %v656 = vpop.f32.mrf.mxu0
        %v657 = vadd.f32 0.0, %v656
        %v658 = vpop.f32.mrf.mxu0
        %v659 = vadd.f32 0.0, %v658
        %660 = vmatmul.bf16.gmra.mxu0 %v439
        %v661 = vpop.f32.mrf.mxu0
        %v662 = vadd.f32 0.0, %v661
        %v663 = vpop.f32.mrf.mxu0
        %v664 = vadd.f32 0.0, %v663
        %665 = vmatmul.bf16.gmra.mxu0 %v442
        %v666 = vpop.f32.mrf.mxu0
        %v667 = vadd.f32 0.0, %v666
        %v668 = vpop.f32.mrf.mxu0
        %v669 = vadd.f32 0.0, %v668
        %670 = vmatmul.bf16.gmra.mxu0 %v445
        %v671 = vpop.f32.mrf.mxu0
        %v672 = vadd.f32 0.0, %v671
        %v673 = vpop.f32.mrf.mxu0
        %v674 = vadd.f32 0.0, %v673
        %675 = vmatmul.bf16.gmra.mxu0 %v448
        %v676 = vpop.f32.mrf.mxu0
        %v677 = vadd.f32 0.0, %v676
        %v678 = vpop.f32.mrf.mxu0
        %v679 = vadd.f32 0.0, %v678
        %680 = vmatmul.bf16.gmra.mxu0 %v451
        %v681 = vpop.f32.mrf.mxu0
        %v682 = vadd.f32 0.0, %v681
        %v683 = vpop.f32.mrf.mxu0
        %v684 = vadd.f32 0.0, %v683
        %685 = vmatmul.bf16.gmra.mxu0 %v454
        %v686 = vpop.f32.mrf.mxu0
        %v687 = vadd.f32 0.0, %v686
        %v688 = vpop.f32.mrf.mxu0
        %v689 = vadd.f32 0.0, %v688
        %690 = vmatmul.bf16.gmra.mxu0 %v457
        %v691 = vpop.f32.mrf.mxu0
        %v692 = vadd.f32 0.0, %v691
        %v693 = vpop.f32.mrf.mxu0
        %v694 = vadd.f32 0.0, %v693
        %695 = vmatmul.bf16.gmra.mxu0 %v460
        %v696 = vpop.f32.mrf.mxu0
        %v697 = vadd.f32 0.0, %v696
        %v698 = vpop.f32.mrf.mxu0
        %v699 = vadd.f32 0.0, %v698
        %700 = vmatmul.bf16.gmra.mxu0 %v463
        %v701 = vpop.f32.mrf.mxu0
        %v702 = vadd.f32 0.0, %v701
        %v703 = vpop.f32.mrf.mxu0
        %v704 = vadd.f32 0.0, %v703
        %705 = vmatmul.bf16.gmra.mxu0 %v466
        %v706 = vpop.f32.mrf.mxu0
        %v707 = vadd.f32 0.0, %v706
        %v708 = vpop.f32.mrf.mxu0
        %v709 = vadd.f32 0.0, %v708
        %710 = vmatmul.bf16.gmra.mxu0 %v469
        %v711 = vpop.f32.mrf.mxu0
        %v712 = vadd.f32 0.0, %v711
        %v713 = vpop.f32.mrf.mxu0
        %v714 = vadd.f32 0.0, %v713
        %715 = vmatmul.bf16.gmra.mxu0 %v472
        %v716 = vpop.f32.mrf.mxu0
        %v717 = vadd.f32 0.0, %v716
        %v718 = vpop.f32.mrf.mxu0
        %v719 = vadd.f32 0.0, %v718
        %720 = vmatmul.bf16.gmra.mxu0 %v475
        %v721 = vpop.f32.mrf.mxu0
        %v722 = vadd.f32 0.0, %v721
        %v723 = vpop.f32.mrf.mxu0
        %v724 = vadd.f32 0.0, %v723
        %725 = vmatmul.bf16.gmra.mxu0 %v478
        %v726 = vpop.f32.mrf.mxu0
        %v727 = vadd.f32 0.0, %v726
        %v728 = vpop.f32.mrf.mxu0
        %v729 = vadd.f32 0.0, %v728
        %730 = vmatmul.bf16.gmra.mxu0 %v481
        %v731 = vpop.f32.mrf.mxu0
        %v732 = vadd.f32 0.0, %v731
        %v733 = vpop.f32.mrf.mxu0
        %v734 = vadd.f32 0.0, %v733
        %735 = vmatmul.bf16.gmra.mxu0 %v484
        %v736 = vpop.f32.mrf.mxu0
        %v737 = vadd.f32 0.0, %v736
        %v738 = vpop.f32.mrf.mxu0
        %v739 = vadd.f32 0.0, %v738
        %740 = vmatmul.bf16.gmra.mxu0 %v487
        %v741 = vpop.f32.mrf.mxu0
        %v742 = vadd.f32 0.0, %v741
        %v743 = vpop.f32.mrf.mxu0
        %v744 = vadd.f32 0.0, %v743
        %745 = vmatmul.bf16.gmra.mxu0 %v490
        %v746 = vpop.f32.mrf.mxu0
        %v747 = vadd.f32 0.0, %v746
        %v748 = vpop.f32.mrf.mxu0
        %v749 = vadd.f32 0.0, %v748
        %750 = vmatmul.bf16.gmra.mxu0 %v493
        %v751 = vpop.f32.mrf.mxu0
        %v752 = vadd.f32 0.0, %v751
        %v753 = vpop.f32.mrf.mxu0
        %v754 = vadd.f32 0.0, %v753
        %755 = vmatmul.bf16.gmra.mxu0 %v496
        %v756 = vpop.f32.mrf.mxu0
        %v757 = vadd.f32 0.0, %v756
        %v758 = vpop.f32.mrf.mxu0
        %v759 = vadd.f32 0.0, %v758
        %760 = vmatmul.bf16.gmra.mxu0 %v499
        %v761 = vpop.f32.mrf.mxu0
        %v762 = vadd.f32 0.0, %v761
        %v763 = vpop.f32.mrf.mxu0
        %v764 = vadd.f32 0.0, %v763
        %765 = vdwg.mxu0
        %v766 = vmax.f32 %v518, %v520
        %v767 = vmax.f32 %v766, %v523
        %v768 = vmax.f32 %v767, %v525
        %v769 = vrot.slane %v768, 4
        %v770 = vmax.f32 %v768, %v769
        %v771 = vrot.slane %v770, 2
        %v772 = vmax.f32 %v770, %v771
        %v773 = vrot.slane %v772, 1
        %v774 = vmax.f32 %v772, %v773
        %v775 = vmax.f32 %v647, %v649
        %v776 = vmax.f32 %v775, %v652
        %v777 = vmax.f32 %v776, %v654
        %v778 = vrot.slane %v777, 4
        %v779 = vmax.f32 %v777, %v778
        %v780 = vrot.slane %v779, 2
        %v781 = vmax.f32 %v779, %v780
        %v782 = vrot.slane %v781, 1
        %v783 = vmax.f32 %v781, %v782
        %v784 = vmax.f32 %v528, %v530
        %v785 = vmax.f32 %v784, %v533
        %v786 = vmax.f32 %v785, %v535
        %v787 = vrot.slane %v786, 4
        %v788 = vmax.f32 %v786, %v787
        %v789 = vrot.slane %v788, 2
        %v790 = vmax.f32 %v788, %v789
        %v791 = vrot.slane %v790, 1
        %v792 = vmax.f32 %v790, %v791
        %v793 = vmax.f32 %v657, %v659
        %v794 = vmax.f32 %v793, %v662
        %v795 = vmax.f32 %v794, %v664
        %v796 = vrot.slane %v795, 4
        %v797 = vmax.f32 %v795, %v796
        %v798 = vrot.slane %v797, 2
        %v799 = vmax.f32 %v797, %v798
        %v800 = vrot.slane %v799, 1
        %v801 = vmax.f32 %v799, %v800
        %v802 = vmax.f32 %v538, %v540
        %v803 = vmax.f32 %v802, %v543
        %v804 = vmax.f32 %v803, %v545
        %v805 = vrot.slane %v804, 4
        %v806 = vmax.f32 %v804, %v805
        %v807 = vrot.slane %v806, 2
        %v808 = vmax.f32 %v806, %v807
        %v809 = vrot.slane %v808, 1
        %v810 = vmax.f32 %v808, %v809
        %v811 = vmax.f32 %v667, %v669
        %v812 = vmax.f32 %v811, %v672
        %v813 = vmax.f32 %v812, %v674
        %v814 = vrot.slane %v813, 4
        %v815 = vmax.f32 %v813, %v814
        %v816 = vrot.slane %v815, 2
        %v817 = vmax.f32 %v815, %v816
        %v818 = vrot.slane %v817, 1
        %v819 = vmax.f32 %v817, %v818
        %v820 = vmax.f32 %v548, %v550
        %v821 = vmax.f32 %v820, %v553
        %v822 = vmax.f32 %v821, %v555
        %v823 = vrot.slane %v822, 4
        %v824 = vmax.f32 %v822, %v823
        %v825 = vrot.slane %v824, 2
        %v826 = vmax.f32 %v824, %v825
        %v827 = vrot.slane %v826, 1
        %v828 = vmax.f32 %v826, %v827
        %v829 = vmax.f32 %v677, %v679
        %v830 = vmax.f32 %v829, %v682
        %v831 = vmax.f32 %v830, %v684
        %v832 = vrot.slane %v831, 4
        %v833 = vmax.f32 %v831, %v832
        %v834 = vrot.slane %v833, 2
        %v835 = vmax.f32 %v833, %v834
        %v836 = vrot.slane %v835, 1
        %v837 = vmax.f32 %v835, %v836
        %v838 = vsub.f32 %v518, %v774
        %v839 = vsub.f32 %v647, %v783
        %v840 = vsub.f32 %v520, %v774
        %v841 = vsub.f32 %v649, %v783
        %v842 = vsub.f32 %v523, %v774
        %v843 = vsub.f32 %v652, %v783
        %v844 = vsub.f32 %v525, %v774
        %v845 = vsub.f32 %v654, %v783
        %v846 = vsub.f32 %v528, %v792
        %v847 = vsub.f32 %v657, %v801
        %v848 = vsub.f32 %v530, %v792
        %v849 = vsub.f32 %v659, %v801
        %v850 = vsub.f32 %v533, %v792
        %v851 = vsub.f32 %v662, %v801
        %v852 = vsub.f32 %v535, %v792
        %v853 = vsub.f32 %v664, %v801
        %v854 = vsub.f32 %v538, %v810
        %v855 = vsub.f32 %v667, %v819
        %v856 = vsub.f32 %v540, %v810
        %v857 = vsub.f32 %v669, %v819
        %v858 = vsub.f32 %v543, %v810
        %v859 = vsub.f32 %v672, %v819
        %v860 = vsub.f32 %v545, %v810
        %v861 = vsub.f32 %v674, %v819
        %v862 = vsub.f32 %v548, %v828
        %v863 = vsub.f32 %v677, %v837
        %v864 = vsub.f32 %v550, %v828
        %v865 = vsub.f32 %v679, %v837
        %v866 = vsub.f32 %v553, %v828
        %v867 = vsub.f32 %v682, %v837
        %v868 = vsub.f32 %v555, %v828
        %v869 = vsub.f32 %v684, %v837
        %v870 = vmul.f32 %v838, 1.442695
        %v871 = vpow.pop %v870
        %v872 = vmul.f32 %v839, 1.442695
        %v873 = vpow.pop %v872
        %v874 = vmul.f32 %v840, 1.442695
        %v875 = vpow.pop %v874
        %v876 = vmul.f32 %v841, 1.442695
        %v877 = vpow.pop %v876
        %v878 = vmul.f32 %v842, 1.442695
        %v879 = vpow.pop %v878
        %v880 = vmul.f32 %v843, 1.442695
        %v881 = vpow.pop %v880
        %v882 = vmul.f32 %v844, 1.442695
        %v883 = vpow.pop %v882
        %v884 = vmul.f32 %v845, 1.442695
        %v885 = vpow.pop %v884
        %v886 = vmul.f32 %v846, 1.442695
        %v887 = vpow.pop %v886
        %v888 = vmul.f32 %v847, 1.442695
        %v889 = vpow.pop %v888
        %v890 = vmul.f32 %v848, 1.442695
        %v891 = vpow.pop %v890
        %v892 = vmul.f32 %v849, 1.442695
        %v893 = vpow.pop %v892
        %v894 = vmul.f32 %v850, 1.442695
        %v895 = vpow.pop %v894
        %v896 = vmul.f32 %v851, 1.442695
        %v897 = vpow.pop %v896
        %v898 = vmul.f32 %v852, 1.442695
        %v899 = vpow.pop %v898
        %v900 = vmul.f32 %v853, 1.442695
        %v901 = vpow.pop %v900
        %v902 = vmul.f32 %v854, 1.442695
        %v903 = vpow.pop %v902
        %v904 = vmul.f32 %v855, 1.442695
        %v905 = vpow.pop %v904
        %v906 = vmul.f32 %v856, 1.442695
        %v907 = vpow.pop %v906
        %v908 = vmul.f32 %v857, 1.442695
        %v909 = vpow.pop %v908
        %v910 = vmul.f32 %v858, 1.442695
        %v911 = vpow.pop %v910
        %v912 = vmul.f32 %v859, 1.442695
        %v913 = vpow.pop %v912
        %v914 = vmul.f32 %v860, 1.442695
        %v915 = vpow.pop %v914
        %v916 = vmul.f32 %v861, 1.442695
        %v917 = vpow.pop %v916
        %v918 = vmul.f32 %v862, 1.442695
        %v919 = vpow.pop %v918
        %v920 = vmul.f32 %v863, 1.442695
        %v921 = vpow.pop %v920
        %v922 = vmul.f32 %v864, 1.442695
        %v923 = vpow.pop %v922
        %v924 = vmul.f32 %v865, 1.442695
        %v925 = vpow.pop %v924
        %v926 = vmul.f32 %v866, 1.442695
        %v927 = vpow.pop %v926
        %v928 = vmul.f32 %v867, 1.442695
        %v929 = vpow.pop %v928
        %v930 = vmul.f32 %v868, 1.442695
        %v931 = vpow.pop %v930
        %v932 = vmul.f32 %v869, 1.442695
        %v933 = vpow.pop %v932
        %v934 = vadd.f32 %v871, %v875
        %v935 = vadd.f32 %v934, %v879
        %v936 = vadd.f32 %v935, %v883
        %v937 = vrot.slane %v936, 4
        %v938 = vadd.f32 %v936, %v937
        %v939 = vrot.slane %v938, 2
        %v940 = vadd.f32 %v938, %v939
        %v941 = vrot.slane %v940, 1
        %v942 = vadd.f32 %v940, %v941
        %v943 = vadd.f32 %v873, %v877
        %v944 = vadd.f32 %v943, %v881
        %v945 = vadd.f32 %v944, %v885
        %v946 = vrot.slane %v945, 4
        %v947 = vadd.f32 %v945, %v946
        %v948 = vrot.slane %v947, 2
        %v949 = vadd.f32 %v947, %v948
        %v950 = vrot.slane %v949, 1
        %v951 = vadd.f32 %v949, %v950
        %v952 = vadd.f32 %v887, %v891
        %v953 = vadd.f32 %v952, %v895
        %v954 = vadd.f32 %v953, %v899
        %v955 = vrot.slane %v954, 4
        %v956 = vadd.f32 %v954, %v955
        %v957 = vrot.slane %v956, 2
        %v958 = vadd.f32 %v956, %v957
        %v959 = vrot.slane %v958, 1
        %v960 = vadd.f32 %v958, %v959
        %v961 = vadd.f32 %v889, %v893
        %v962 = vadd.f32 %v961, %v897
        %v963 = vadd.f32 %v962, %v901
        %v964 = vrot.slane %v963, 4
        %v965 = vadd.f32 %v963, %v964
        %v966 = vrot.slane %v965, 2
        %v967 = vadd.f32 %v965, %v966
        %v968 = vrot.slane %v967, 1
        %v969 = vadd.f32 %v967, %v968
        %v970 = vadd.f32 %v903, %v907
        %v971 = vadd.f32 %v970, %v911
        %v972 = vadd.f32 %v971, %v915
        %v973 = vrot.slane %v972, 4
        %v974 = vadd.f32 %v972, %v973
        %v975 = vrot.slane %v974, 2
        %v976 = vadd.f32 %v974, %v975
        %v977 = vrot.slane %v976, 1
        %v978 = vadd.f32 %v976, %v977
        %v979 = vadd.f32 %v905, %v909
        %v980 = vadd.f32 %v979, %v913
        %v981 = vadd.f32 %v980, %v917
        %v982 = vrot.slane %v981, 4
        %v983 = vadd.f32 %v981, %v982
        %v984 = vrot.slane %v983, 2
        %v985 = vadd.f32 %v983, %v984
        %v986 = vrot.slane %v985, 1
        %v987 = vadd.f32 %v985, %v986
        %v988 = vadd.f32 %v919, %v923
        %v989 = vadd.f32 %v988, %v927
        %v990 = vadd.f32 %v989, %v931
        %v991 = vrot.slane %v990, 4
        %v992 = vadd.f32 %v990, %v991
        %v993 = vrot.slane %v992, 2
        %v994 = vadd.f32 %v992, %v993
        %v995 = vrot.slane %v994, 1
        %v996 = vadd.f32 %v994, %v995
        %v997 = vadd.f32 %v921, %v925
        %v998 = vadd.f32 %v997, %v929
        %v999 = vadd.f32 %v998, %v933
        %v1000 = vrot.slane %v999, 4
        %v1001 = vadd.f32 %v999, %v1000
        %v1002 = vrot.slane %v1001, 2
        %v1003 = vadd.f32 %v1001, %v1002
        %v1004 = vrot.slane %v1003, 1
        %v1005 = vadd.f32 %v1003, %v1004
        %v1006 = vrcp.pop %v942
        %v1007 = vrcp.pop %v951
        %v1008 = vrcp.pop %v960
        %v1009 = vrcp.pop %v969
        %v1010 = vrcp.pop %v978
        %v1011 = vrcp.pop %v987
        %v1012 = vrcp.pop %v996
        %v1013 = vrcp.pop %v1005
        %v1014 = vmul.f32 %v871, %v1006
        %v1015 = vmul.f32 %v873, %v1007
        %v1016 = vmul.f32 %v875, %v1006
        %v1017 = vmul.f32 %v877, %v1007
        %v1018 = vmul.f32 %v879, %v1006
        %v1019 = vmul.f32 %v881, %v1007
        %v1020 = vmul.f32 %v883, %v1006
        %v1021 = vmul.f32 %v885, %v1007
        %v1022 = vmul.f32 %v887, %v1008
        %v1023 = vmul.f32 %v889, %v1009
        %v1024 = vmul.f32 %v891, %v1008
        %v1025 = vmul.f32 %v893, %v1009
        %v1026 = vmul.f32 %v895, %v1008
        %v1027 = vmul.f32 %v897, %v1009
        %v1028 = vmul.f32 %v899, %v1008
        %v1029 = vmul.f32 %v901, %v1009
        %v1030 = vmul.f32 %v903, %v1010
        %v1031 = vmul.f32 %v905, %v1011
        %v1032 = vmul.f32 %v907, %v1010
        %v1033 = vmul.f32 %v909, %v1011
        %v1034 = vmul.f32 %v911, %v1010
        %v1035 = vmul.f32 %v913, %v1011
        %v1036 = vmul.f32 %v915, %v1010
        %v1037 = vmul.f32 %v917, %v1011
        %v1038 = vmul.f32 %v919, %v1012
        %v1039 = vmul.f32 %v921, %v1013
        %v1040 = vmul.f32 %v923, %v1012
        %v1041 = vmul.f32 %v925, %v1013
        %v1042 = vmul.f32 %v927, %v1012
        %v1043 = vmul.f32 %v929, %v1013
        %v1044 = vmul.f32 %v931, %v1012
        %v1045 = vmul.f32 %v933, %v1013
        %v1046 = vmax.f32 %v558, %v687
        %1047 = vmax.xlane.f32.xlu0 %v1046
        %v1048 = vpop.xlane.xlu0 %1047
        %v1049 = vmax.f32 %v560, %v689
        %1050 = vmax.xlane.f32.xlu0 %v1049
        %v1051 = vpop.xlane.xlu0 %1050
        %v1052 = vmax.f32 %v563, %v692
        %1053 = vmax.xlane.f32.xlu0 %v1052
        %v1054 = vpop.xlane.xlu0 %1053
        %v1055 = vmax.f32 %v565, %v694
        %1056 = vmax.xlane.f32.xlu0 %v1055
        %v1057 = vpop.xlane.xlu0 %1056
        %v1058 = vmax.f32 %v568, %v697
        %1059 = vmax.xlane.f32.xlu0 %v1058
        %v1060 = vpop.xlane.xlu0 %1059
        %v1061 = vmax.f32 %v570, %v699
        %1062 = vmax.xlane.f32.xlu0 %v1061
        %v1063 = vpop.xlane.xlu0 %1062
        %v1064 = vmax.f32 %v573, %v702
        %1065 = vmax.xlane.f32.xlu0 %v1064
        %v1066 = vpop.xlane.xlu0 %1065
        %v1067 = vmax.f32 %v575, %v704
        %1068 = vmax.xlane.f32.xlu0 %v1067
        %v1069 = vpop.xlane.xlu0 %1068
        %v1070 = vmax.f32 %v578, %v707
        %1071 = vmax.xlane.f32.xlu0 %v1070
        %v1072 = vpop.xlane.xlu0 %1071
        %v1073 = vmax.f32 %v580, %v709
        %1074 = vmax.xlane.f32.xlu0 %v1073
        %v1075 = vpop.xlane.xlu0 %1074
        %v1076 = vmax.f32 %v583, %v712
        %1077 = vmax.xlane.f32.xlu0 %v1076
        %v1078 = vpop.xlane.xlu0 %1077
        %v1079 = vmax.f32 %v585, %v714
        %1080 = vmax.xlane.f32.xlu0 %v1079
        %v1081 = vpop.xlane.xlu0 %1080
        %v1082 = vmax.f32 %v588, %v717
        %1083 = vmax.xlane.f32.xlu0 %v1082
        %v1084 = vpop.xlane.xlu0 %1083
        %v1085 = vmax.f32 %v590, %v719
        %1086 = vmax.xlane.f32.xlu0 %v1085
        %v1087 = vpop.xlane.xlu0 %1086
        %v1088 = vmax.f32 %v593, %v722
        %1089 = vmax.xlane.f32.xlu0 %v1088
        %v1090 = vpop.xlane.xlu0 %1089
        %v1091 = vmax.f32 %v595, %v724
        %1092 = vmax.xlane.f32.xlu0 %v1091
        %v1093 = vpop.xlane.xlu0 %1092
        %v1094 = vsub.f32 %v558, %v1048
        %v1095 = vsub.f32 %v687, %v1048
        %v1096 = vsub.f32 %v560, %v1051
        %v1097 = vsub.f32 %v689, %v1051
        %v1098 = vsub.f32 %v563, %v1054
        %v1099 = vsub.f32 %v692, %v1054
        %v1100 = vsub.f32 %v565, %v1057
        %v1101 = vsub.f32 %v694, %v1057
        %v1102 = vsub.f32 %v568, %v1060
        %v1103 = vsub.f32 %v697, %v1060
        %v1104 = vsub.f32 %v570, %v1063
        %v1105 = vsub.f32 %v699, %v1063
        %v1106 = vsub.f32 %v573, %v1066
        %v1107 = vsub.f32 %v702, %v1066
        %v1108 = vsub.f32 %v575, %v1069
        %v1109 = vsub.f32 %v704, %v1069
        %v1110 = vsub.f32 %v578, %v1072
        %v1111 = vsub.f32 %v707, %v1072
        %v1112 = vsub.f32 %v580, %v1075
        %v1113 = vsub.f32 %v709, %v1075
        %v1114 = vsub.f32 %v583, %v1078
        %v1115 = vsub.f32 %v712, %v1078
        %v1116 = vsub.f32 %v585, %v1081
        %v1117 = vsub.f32 %v714, %v1081
        %v1118 = vsub.f32 %v588, %v1084
        %v1119 = vsub.f32 %v717, %v1084
        %v1120 = vsub.f32 %v590, %v1087
        %v1121 = vsub.f32 %v719, %v1087
        %v1122 = vsub.f32 %v593, %v1090
        %v1123 = vsub.f32 %v722, %v1090
        %v1124 = vsub.f32 %v595, %v1093
        %v1125 = vsub.f32 %v724, %v1093
        %v1126 = vmul.f32 %v1094, 1.442695
        %v1127 = vpow.pop %v1126
        %v1128 = vmul.f32 %v1095, 1.442695
        %v1129 = vpow.pop %v1128
        %v1130 = vmul.f32 %v1096, 1.442695
        %v1131 = vpow.pop %v1130
        %v1132 = vmul.f32 %v1097, 1.442695
        %v1133 = vpow.pop %v1132
        %v1134 = vmul.f32 %v1098, 1.442695
        %v1135 = vpow.pop %v1134
        %v1136 = vmul.f32 %v1099, 1.442695
        %v1137 = vpow.pop %v1136
        %v1138 = vmul.f32 %v1100, 1.442695
        %v1139 = vpow.pop %v1138
        %v1140 = vmul.f32 %v1101, 1.442695
        %v1141 = vpow.pop %v1140
        %v1142 = vmul.f32 %v1102, 1.442695
        %v1143 = vpow.pop %v1142
        %v1144 = vmul.f32 %v1103, 1.442695
        %v1145 = vpow.pop %v1144
        %v1146 = vmul.f32 %v1104, 1.442695
        %v1147 = vpow.pop %v1146
        %v1148 = vmul.f32 %v1105, 1.442695
        %v1149 = vpow.pop %v1148
        %v1150 = vmul.f32 %v1106, 1.442695
        %v1151 = vpow.pop %v1150
        %v1152 = vmul.f32 %v1107, 1.442695
        %v1153 = vpow.pop %v1152
        %v1154 = vmul.f32 %v1108, 1.442695
        %v1155 = vpow.pop %v1154
        %v1156 = vmul.f32 %v1109, 1.442695
        %v1157 = vpow.pop %v1156
        %v1158 = vmul.f32 %v1110, 1.442695
        %v1159 = vpow.pop %v1158
        %v1160 = vmul.f32 %v1111, 1.442695
        %v1161 = vpow.pop %v1160
        %v1162 = vmul.f32 %v1112, 1.442695
        %v1163 = vpow.pop %v1162
        %v1164 = vmul.f32 %v1113, 1.442695
        %v1165 = vpow.pop %v1164
        %v1166 = vmul.f32 %v1114, 1.442695
        %v1167 = vpow.pop %v1166
        %v1168 = vmul.f32 %v1115, 1.442695
        %v1169 = vpow.pop %v1168
        %v1170 = vmul.f32 %v1116, 1.442695
        %v1171 = vpow.pop %v1170
        %v1172 = vmul.f32 %v1117, 1.442695
        %v1173 = vpow.pop %v1172
        %v1174 = vmul.f32 %v1118, 1.442695
        %v1175 = vpow.pop %v1174
        %v1176 = vmul.f32 %v1119, 1.442695
        %v1177 = vpow.pop %v1176
        %v1178 = vmul.f32 %v1120, 1.442695
        %v1179 = vpow.pop %v1178
        %v1180 = vmul.f32 %v1121, 1.442695
        %v1181 = vpow.pop %v1180
        %v1182 = vmul.f32 %v1122, 1.442695
        %v1183 = vpow.pop %v1182
        %v1184 = vmul.f32 %v1123, 1.442695
        %v1185 = vpow.pop %v1184
        %v1186 = vmul.f32 %v1124, 1.442695
        %v1187 = vpow.pop %v1186
        %v1188 = vmul.f32 %v1125, 1.442695
        %v1189 = vpow.pop %v1188
        %v1190 = vadd.f32 %v1127, %v1129
        %1191 = vadd.xlane.f32.xlu0 %v1190
        %v1192 = vpop.xlane.xlu0 %1191
        %v1193 = vadd.f32 %v1131, %v1133
        %1194 = vadd.xlane.f32.xlu0 %v1193
        %v1195 = vpop.xlane.xlu0 %1194
        %v1196 = vadd.f32 %v1135, %v1137
        %1197 = vadd.xlane.f32.xlu0 %v1196
        %v1198 = vpop.xlane.xlu0 %1197
        %v1199 = vadd.f32 %v1139, %v1141
        %1200 = vadd.xlane.f32.xlu0 %v1199
        %v1201 = vpop.xlane.xlu0 %1200
        %v1202 = vadd.f32 %v1143, %v1145
        %1203 = vadd.xlane.f32.xlu0 %v1202
        %v1204 = vpop.xlane.xlu0 %1203
        %v1205 = vadd.f32 %v1147, %v1149
        %1206 = vadd.xlane.f32.xlu0 %v1205
        %v1207 = vpop.xlane.xlu0 %1206
        %v1208 = vadd.f32 %v1151, %v1153
        %1209 = vadd.xlane.f32.xlu0 %v1208
        %v1210 = vpop.xlane.xlu0 %1209
        %v1211 = vadd.f32 %v1155, %v1157
        %1212 = vadd.xlane.f32.xlu0 %v1211
        %v1213 = vpop.xlane.xlu0 %1212
        %v1214 = vadd.f32 %v1159, %v1161
        %1215 = vadd.xlane.f32.xlu0 %v1214
        %v1216 = vpop.xlane.xlu0 %1215
        %v1217 = vadd.f32 %v1163, %v1165
        %1218 = vadd.xlane.f32.xlu0 %v1217
        %v1219 = vpop.xlane.xlu0 %1218
        %v1220 = vadd.f32 %v1167, %v1169
        %1221 = vadd.xlane.f32.xlu0 %v1220
        %v1222 = vpop.xlane.xlu0 %1221
        %v1223 = vadd.f32 %v1171, %v1173
        %1224 = vadd.xlane.f32.xlu0 %v1223
        %v1225 = vpop.xlane.xlu0 %1224
        %v1226 = vadd.f32 %v1175, %v1177
        %1227 = vadd.xlane.f32.xlu0 %v1226
        %v1228 = vpop.xlane.xlu0 %1227
        %v1229 = vadd.f32 %v1179, %v1181
        %1230 = vadd.xlane.f32.xlu0 %v1229
        %v1231 = vpop.xlane.xlu0 %1230
        %v1232 = vadd.f32 %v1183, %v1185
        %1233 = vadd.xlane.f32.xlu0 %v1232
        %v1234 = vpop.xlane.xlu0 %1233
        %v1235 = vadd.f32 %v1187, %v1189
        %1236 = vadd.xlane.f32.xlu0 %v1235
        %v1237 = vpop.xlane.xlu0 %1236
        %v1238 = vrcp.pop %v1192
        %v1239 = vrcp.pop %v1195
        %v1240 = vrcp.pop %v1198
        %v1241 = vrcp.pop %v1201
        %v1242 = vrcp.pop %v1204
        %v1243 = vrcp.pop %v1207
        %v1244 = vrcp.pop %v1210
        %v1245 = vrcp.pop %v1213
        %v1246 = vrcp.pop %v1216
        %v1247 = vrcp.pop %v1219
        %v1248 = vrcp.pop %v1222
        %v1249 = vrcp.pop %v1225
        %v1250 = vrcp.pop %v1228
        %v1251 = vrcp.pop %v1231
        %v1252 = vrcp.pop %v1234
        %v1253 = vrcp.pop %v1237
        %v1254 = vmul.f32 %v1127, %v1238
        %v1255 = vmul.f32 %v1129, %v1238
        %v1256 = vmul.f32 %v1131, %v1239
        %v1257 = vmul.f32 %v1133, %v1239
        %v1258 = vmul.f32 %v1135, %v1240
        %v1259 = vmul.f32 %v1137, %v1240
        %v1260 = vmul.f32 %v1139, %v1241
        %v1261 = vmul.f32 %v1141, %v1241
        %v1262 = vmul.f32 %v1143, %v1242
        %v1263 = vmul.f32 %v1145, %v1242
        %v1264 = vmul.f32 %v1147, %v1243
        %v1265 = vmul.f32 %v1149, %v1243
        %v1266 = vmul.f32 %v1151, %v1244
        %v1267 = vmul.f32 %v1153, %v1244
        %v1268 = vmul.f32 %v1155, %v1245
        %v1269 = vmul.f32 %v1157, %v1245
        %v1270 = vmul.f32 %v1159, %v1246
        %v1271 = vmul.f32 %v1161, %v1246
        %v1272 = vmul.f32 %v1163, %v1247
        %v1273 = vmul.f32 %v1165, %v1247
        %v1274 = vmul.f32 %v1167, %v1248
        %v1275 = vmul.f32 %v1169, %v1248
        %v1276 = vmul.f32 %v1171, %v1249
        %v1277 = vmul.f32 %v1173, %v1249
        %v1278 = vmul.f32 %v1175, %v1250
        %v1279 = vmul.f32 %v1177, %v1250
        %v1280 = vmul.f32 %v1179, %v1251
        %v1281 = vmul.f32 %v1181, %v1251
        %v1282 = vmul.f32 %v1183, %v1252
        %v1283 = vmul.f32 %v1185, %v1252
        %v1284 = vmul.f32 %v1187, %v1253
        %v1285 = vmul.f32 %v1189, %v1253
        %v1286 = vpack.c.bf16 %v600, %v598
        %v1287 = vpack.c.bf16 %v729, %v727
        %v1288 = vpack.c.bf16 %v605, %v603
        %v1289 = vpack.c.bf16 %v734, %v732
        %v1290 = vpack.c.bf16 %v610, %v608
        %v1291 = vpack.c.bf16 %v739, %v737
        %v1292 = vpack.c.bf16 %v615, %v613
        %v1293 = vpack.c.bf16 %v744, %v742
        %v1294 = vpack.c.bf16 %v620, %v618
        %v1295 = vpack.c.bf16 %v749, %v747
        %v1296 = vpack.c.bf16 %v625, %v623
        %v1297 = vpack.c.bf16 %v754, %v752
        %v1298 = vpack.c.bf16 %v630, %v628
        %v1299 = vpack.c.bf16 %v759, %v757
        %v1300 = vpack.c.bf16 %v635, %v633
        %v1301 = vpack.c.bf16 %v764, %v762
        %v1302 = vpack.c.bf16 %v1256, %v1254
        %v1303 = vpack.c.bf16 %v1257, %v1255
        %v1304 = vpack.c.bf16 %v1260, %v1258
        %v1305 = vpack.c.bf16 %v1261, %v1259
        %v1306 = vpack.c.bf16 %v1264, %v1262
        %v1307 = vpack.c.bf16 %v1265, %v1263
        %v1308 = vpack.c.bf16 %v1268, %v1266
        %v1309 = vpack.c.bf16 %v1269, %v1267
        %v1310 = vpack.c.bf16 %v1272, %v1270
        %v1311 = vpack.c.bf16 %v1273, %v1271
        %v1312 = vpack.c.bf16 %v1276, %v1274
        %v1313 = vpack.c.bf16 %v1277, %v1275
        %v1314 = vpack.c.bf16 %v1280, %v1278
        %v1315 = vpack.c.bf16 %v1281, %v1279
        %v1316 = vpack.c.bf16 %v1284, %v1282
        %v1317 = vpack.c.bf16 %v1285, %v1283
        %1318 = vmatpush.bf16.xpose.msra.mxu0 %v1316
        %1319 = vmatpush.bf16.xpose.msra.mxu0 %v1314
        %1320 = vmatpush.bf16.xpose.msra.mxu0 %v1312
        %1321 = vmatpush.bf16.xpose.msra.mxu0 %v1310
        %1322 = vmatpush.bf16.xpose.msra.mxu0 %v1308
        %1323 = vmatpush.bf16.xpose.msra.mxu0 %v1306
        %1324 = vmatpush.bf16.xpose.msra.mxu0 %v1304
        %1325 = vmatpush.bf16.xpose.msra.mxu0 %v1302
        %1326 = vmatmul.bf16.gmra.mxu0 %v1286
        %v1327 = vpop.f32.mrf.mxu0
        %v1328 = vadd.f32 0.0, %v1327
        %v1329 = vpop.f32.mrf.mxu0
        %v1330 = vadd.f32 0.0, %v1329
        %1331 = vmatmul.bf16.gmra.mxu0 %v1288
        %v1332 = vpop.f32.mrf.mxu0
        %v1333 = vadd.f32 0.0, %v1332
        %v1334 = vpop.f32.mrf.mxu0
        %v1335 = vadd.f32 0.0, %v1334
        %1336 = vmatmul.bf16.gmra.mxu0 %v1290
        %v1337 = vpop.f32.mrf.mxu0
        %v1338 = vadd.f32 0.0, %v1337
        %v1339 = vpop.f32.mrf.mxu0
        %v1340 = vadd.f32 0.0, %v1339
        %1341 = vmatmul.bf16.gmra.mxu0 %v1292
        %v1342 = vpop.f32.mrf.mxu0
        %v1343 = vadd.f32 0.0, %v1342
        %v1344 = vpop.f32.mrf.mxu0
        %v1345 = vadd.f32 0.0, %v1344
        %1346 = vmatmul.bf16.gmra.mxu0 %v1294
        %v1347 = vpop.f32.mrf.mxu0
        %v1348 = vadd.f32 0.0, %v1347
        %v1349 = vpop.f32.mrf.mxu0
        %v1350 = vadd.f32 0.0, %v1349
        %1351 = vmatmul.bf16.gmra.mxu0 %v1296
        %v1352 = vpop.f32.mrf.mxu0
        %v1353 = vadd.f32 0.0, %v1352
        %v1354 = vpop.f32.mrf.mxu0
        %v1355 = vadd.f32 0.0, %v1354
        %1356 = vmatmul.bf16.gmra.mxu0 %v1298
        %v1357 = vpop.f32.mrf.mxu0
        %v1358 = vadd.f32 0.0, %v1357
        %v1359 = vpop.f32.mrf.mxu0
        %v1360 = vadd.f32 0.0, %v1359
        %1361 = vmatmul.bf16.gmra.mxu0 %v1300
        %v1362 = vpop.f32.mrf.mxu0
        %v1363 = vadd.f32 0.0, %v1362
        %v1364 = vpop.f32.mrf.mxu0
        %v1365 = vadd.f32 0.0, %v1364
        %1366 = vdwg.mxu0
        %1367 = vmatpush.bf16.xpose.msra.mxu0 %v1317
        %1368 = vmatpush.bf16.xpose.msra.mxu0 %v1315
        %1369 = vmatpush.bf16.xpose.msra.mxu0 %v1313
        %1370 = vmatpush.bf16.xpose.msra.mxu0 %v1311
        %1371 = vmatpush.bf16.xpose.msra.mxu0 %v1309
        %1372 = vmatpush.bf16.xpose.msra.mxu0 %v1307
        %1373 = vmatpush.bf16.xpose.msra.mxu0 %v1305
        %1374 = vmatpush.bf16.xpose.msra.mxu0 %v1303
        %1375 = vmatmul.bf16.gmra.mxu0 %v1287
        %v1376 = vpop.f32.mrf.mxu0
        %v1377 = vadd.f32 %v1328, %v1376
        %v1378 = vpop.f32.mrf.mxu0
        %v1379 = vadd.f32 %v1330, %v1378
        %1380 = vmatmul.bf16.gmra.mxu0 %v1289
        %v1381 = vpop.f32.mrf.mxu0
        %v1382 = vadd.f32 %v1333, %v1381
        %v1383 = vpop.f32.mrf.mxu0
        %v1384 = vadd.f32 %v1335, %v1383
        %1385 = vmatmul.bf16.gmra.mxu0 %v1291
        %v1386 = vpop.f32.mrf.mxu0
        %v1387 = vadd.f32 %v1338, %v1386
        %v1388 = vpop.f32.mrf.mxu0
        %v1389 = vadd.f32 %v1340, %v1388
        %1390 = vmatmul.bf16.gmra.mxu0 %v1293
        %v1391 = vpop.f32.mrf.mxu0
        %v1392 = vadd.f32 %v1343, %v1391
        %v1393 = vpop.f32.mrf.mxu0
        %v1394 = vadd.f32 %v1345, %v1393
        %1395 = vmatmul.bf16.gmra.mxu0 %v1295
        %v1396 = vpop.f32.mrf.mxu0
        %v1397 = vadd.f32 %v1348, %v1396
        %v1398 = vpop.f32.mrf.mxu0
        %v1399 = vadd.f32 %v1350, %v1398
        %1400 = vmatmul.bf16.gmra.mxu0 %v1297
        %v1401 = vpop.f32.mrf.mxu0
        %v1402 = vadd.f32 %v1353, %v1401
        %v1403 = vpop.f32.mrf.mxu0
        %v1404 = vadd.f32 %v1355, %v1403
        %1405 = vmatmul.bf16.gmra.mxu0 %v1299
        %v1406 = vpop.f32.mrf.mxu0
        %v1407 = vadd.f32 %v1358, %v1406
        %v1408 = vpop.f32.mrf.mxu0
        %v1409 = vadd.f32 %v1360, %v1408
        %1410 = vmatmul.bf16.gmra.mxu0 %v1301
        %v1411 = vpop.f32.mrf.mxu0
        %v1412 = vadd.f32 %v1363, %v1411
        %v1413 = vpop.f32.mrf.mxu0
        %v1414 = vadd.f32 %v1365, %v1413
        %1415 = vdwg.mxu0
        %v1416 = vld [vmem:[%s5] sm:$0xff]
        %v1417 = vld [vmem:[%s5 + $0x8] sm:$0xff]
        %v1418 = vld [vmem:[%s5 + $0x10] sm:$0xff]
        %v1419 = vld [vmem:[%s5 + $0x18] sm:$0xff]
        %v1420 = vld [vmem:[%s5 + $0x20] sm:$0xff]
        %v1421 = vld [vmem:[%s5 + $0x28] sm:$0xff]
        %v1422 = vld [vmem:[%s5 + $0x30] sm:$0xff]
        %v1423 = vld [vmem:[%s5 + $0x38] sm:$0xff]
        %v1424 = vld [vmem:[%s5 + $0x40] sm:$0xff]
        %v1425 = vld [vmem:[%s5 + $0x48] sm:$0xff]
        %v1426 = vld [vmem:[%s5 + $0x50] sm:$0xff]
        %v1427 = vld [vmem:[%s5 + $0x58] sm:$0xff]
        %v1428 = vld [vmem:[%s5 + $0x60] sm:$0xff]
        %v1429 = vld [vmem:[%s5 + $0x68] sm:$0xff]
        %v1430 = vld [vmem:[%s5 + $0x70] sm:$0xff]
        %v1431 = vld [vmem:[%s5 + $0x78] sm:$0xff]
        %v1432 = vmul.f32 %v1377, %v1416
        %v1433 = vmul.f32 %v1379, %v1417
        %v1434 = vmul.f32 %v1382, %v1418
        %v1435 = vmul.f32 %v1384, %v1419
        %v1436 = vmul.f32 %v1387, %v1420
        %v1437 = vmul.f32 %v1389, %v1421
        %v1438 = vmul.f32 %v1392, %v1422
        %v1439 = vmul.f32 %v1394, %v1423
        %v1440 = vmul.f32 %v1397, %v1424
        %v1441 = vmul.f32 %v1399, %v1425
        %v1442 = vmul.f32 %v1402, %v1426
        %v1443 = vmul.f32 %v1404, %v1427
        %v1444 = vmul.f32 %v1407, %v1428
        %v1445 = vmul.f32 %v1409, %v1429
        %v1446 = vmul.f32 %v1412, %v1430
        %v1447 = vmul.f32 %v1414, %v1431
        %v1448 = vld [vmem:[%s2] sm:$0x3]
        %v1449 = vpack.c.bf16 %v1433, %v1432
        %v1450 = vpack.c.bf16 %v1435, %v1434
        %v1451 = vpack.c.bf16 %v1437, %v1436
        %v1452 = vpack.c.bf16 %v1439, %v1438
        %v1453 = vpack.c.bf16 %v1441, %v1440
        %v1454 = vpack.c.bf16 %v1443, %v1442
        %v1455 = vpack.c.bf16 %v1445, %v1444
        %v1456 = vpack.c.bf16 %v1447, %v1446
        %1457 = vmatpush.bf16.msra.mxu0 %v1456
        %1458 = vmatpush.bf16.msra.mxu0 %v1455
        %1459 = vmatpush.bf16.msra.mxu0 %v1454
        %1460 = vmatpush.bf16.msra.mxu0 %v1453
        %1461 = vmatpush.bf16.msra.mxu0 %v1452
        %1462 = vmatpush.bf16.msra.mxu0 %v1451
        %1463 = vmatpush.bf16.msra.mxu0 %v1450
        %1464 = vmatpush.bf16.msra.mxu0 %v1449
        %1465 = vmatmul.bf16.gmra.mxu0 %v1448
        %v1466 = vpop.f32.mrf.mxu0
        %v1467 = vadd.f32 0.0, %v1466
        %v1468 = vpop.f32.mrf.mxu0
        %1469 = vdwg.mxu0
        %v1470 = vpack.c.bf16 %v1467, %v1467
        %v1471 = vpack.c.bf16 %v1016, %v1014
        %v1472 = vpack.c.bf16 %v1017, %v1015
        %v1473 = vpack.c.bf16 %v1020, %v1018
        %v1474 = vpack.c.bf16 %v1021, %v1019
        %v1475 = vpack.c.bf16 %v1024, %v1022
        %v1476 = vpack.c.bf16 %v1025, %v1023
        %v1477 = vpack.c.bf16 %v1028, %v1026
        %v1478 = vpack.c.bf16 %v1029, %v1027
        %v1479 = vpack.c.bf16 %v1032, %v1030
        %v1480 = vpack.c.bf16 %v1033, %v1031
        %v1481 = vpack.c.bf16 %v1036, %v1034
        %v1482 = vpack.c.bf16 %v1037, %v1035
        %v1483 = vpack.c.bf16 %v1040, %v1038
        %v1484 = vpack.c.bf16 %v1041, %v1039
        %v1485 = vpack.c.bf16 %v1044, %v1042
        %v1486 = vpack.c.bf16 %v1045, %v1043
        %v1487 = vld [vmem:[%s3] sm:$0xf]
        %1489 = vset.pattern.permute.xlu0 0
        %1490 = vperm.xlu0 %1489, %v1487
        %v1491 = vpop.permute.xlu0 %1490
        %1493 = vmatpush.bf16.msra.mxu0 %v1485
        %1494 = vmatpush.bf16.msra.mxu0 %v1483
        %1495 = vmatpush.bf16.msra.mxu0 %v1481
        %1496 = vmatpush.bf16.msra.mxu0 %v1479
        %1497 = vmatpush.bf16.msra.mxu0 %v1477
        %1498 = vmatpush.bf16.msra.mxu0 %v1475
        %1499 = vmatpush.bf16.msra.mxu0 %v1473
        %1500 = vmatpush.bf16.msra.mxu0 %v1471
        %1501 = vmatmul.bf16.gmra.mxu0 %v1470
        %v1502 = vpop.f32.mrf.mxu0
        %v1503 = vadd.f32 %v1491, %v1502
        %v1504 = vpop.f32.mrf.mxu0
        %1505 = vdwg.mxu0
        %1506 = vmatpush.bf16.msra.mxu0 %v1486
        %1507 = vmatpush.bf16.msra.mxu0 %v1484
        %1508 = vmatpush.bf16.msra.mxu0 %v1482
        %1509 = vmatpush.bf16.msra.mxu0 %v1480
        %1510 = vmatpush.bf16.msra.mxu0 %v1478
        %1511 = vmatpush.bf16.msra.mxu0 %v1476
        %1512 = vmatpush.bf16.msra.mxu0 %v1474
        %1513 = vmatpush.bf16.msra.mxu0 %v1472
        %1514 = vmatmul.bf16.gmra.mxu0 %v1470
        %v1515 = vpop.f32.mrf.mxu0
        %v1516 = vadd.f32 %v1491, %v1515
        %v1517 = vpop.f32.mrf.mxu0
        %1518 = vdwg.mxu0
        %vm1519 = vcmask 1043456
        %v1520 = vsel %vm1519, %v1503, 0.0
        %v1521 = vrot.slane %v1520, 4
        %v1522 = vadd.f32 %v1520, %v1521
        %v1523 = vrot.slane %v1522, 2
        %v1524 = vadd.f32 %v1522, %v1523
        %v1525 = vrot.slane %v1524, 1
        %v1526 = vadd.f32 %v1524, %v1525
        %v1527 = vsel %vm1519, %v1516, 0.0
        %v1528 = vrot.slane %v1527, 4
        %v1529 = vadd.f32 %v1527, %v1528
        %v1530 = vrot.slane %v1529, 2
        %v1531 = vadd.f32 %v1529, %v1530
        %v1532 = vrot.slane %v1531, 1
        %v1533 = vadd.f32 %v1531, %v1532
        %v1534 = vrcp.pop 4.0
        %v1535 = vmul.f32 4.0, %v1534
        %v1536 = vsub.f32 1.0, %v1535
        %v1537 = vmul.f32 %v1534, %v1536
        %v1538 = vadd.f32 %v1534, %v1537
        %vm1539 = vweird.f32 %v1534
        %v1540 = vsel %vm1539, %v1534, %v1538
        %v1541 = vmul.f32 %v1526, %v1540
        %v1542 = vmul.f32 %v1533, %v1540
        %v1543 = vsub.f32 %v1503, %v1541
        %v1544 = vsub.f32 %v1516, %v1542
        %v1545 = vmul.f32 %v1543, %v1543
        %v1546 = vmul.f32 %v1544, %v1544
        %v1547 = vsel %vm1519, %v1545, 0.0
        %v1548 = vrot.slane %v1547, 4
        %v1549 = vadd.f32 %v1547, %v1548
        %v1550 = vrot.slane %v1549, 2
        %v1551 = vadd.f32 %v1549, %v1550
        %v1552 = vrot.slane %v1551, 1
        %v1553 = vadd.f32 %v1551, %v1552
        %v1554 = vsel %vm1519, %v1546, 0.0
        %v1555 = vrot.slane %v1554, 4
        %v1556 = vadd.f32 %v1554, %v1555
        %v1557 = vrot.slane %v1556, 2
        %v1558 = vadd.f32 %v1556, %v1557
        %v1559 = vrot.slane %v1558, 1
        %v1560 = vadd.f32 %v1558, %v1559
        %v1561 = vmul.f32 %v1553, %v1540
        %v1562 = vmul.f32 %v1560, %v1540
        %v1563 = vadd.f32 %v1561, 1e-05
        %v1564 = vadd.f32 %v1562, 1e-05
        %v1565 = vrsqrt.pop %v1563
        %v1566 = vmul.f32 %v1565, %v1563
        %v1567 = vmul.f32 %v1566, %v1565
        %v1568 = vmul.f32 0.5, %v1567
        %v1569 = vsub.f32 1.5, %v1568
        %v1570 = vmul.f32 %v1565, %v1569
        %vm1571 = vweird.f32 %v1563
        %vm1572 = vweird.f32 %v1565
        %vm1573 = vmor %vm1571, %vm1572
        %v1574 = vsel %vm1573, %v1565, %v1570
        %v1575 = vrsqrt.pop %v1564
        %v1576 = vmul.f32 %v1575, %v1564
        %v1577 = vmul.f32 %v1576, %v1575
        %v1578 = vmul.f32 0.5, %v1577
        %v1579 = vsub.f32 1.5, %v1578
        %v1580 = vmul.f32 %v1575, %v1579
        %vm1581 = vweird.f32 %v1564
        %vm1582 = vweird.f32 %v1575
        %vm1583 = vmor %vm1581, %vm1582
        %v1584 = vsel %vm1583, %v1575, %v1580
        %v1585 = vmul.f32 %v1543, %v1574
        %v1586 = vmul.f32 %v1544, %v1584
        %v1587 = vld [vmem:[%s4] sm:$0xf]
        %1589 = vset.pattern.permute.xlu0 0
        %1590 = vperm.xlu0 %1589, %v1587
        %v1591 = vpop.permute.xlu0 %1590
        %v1593 = vmul.f32 %v1585, %v1591
        %v1594 = vmul.f32 %v1586, %v1591
        %v1597 = vrot.slane %v1594, 4
        %v1598 = vsel %vm1519, %v1593, %v1597
        %1600 = vst [vmem:[%s244] sm:$0xff] %v1598
        %s1601 = sand.u32 %s159, 1
        %s1602 = scalar_lea.sflag [#allocation3], %s1601
        %s1603 = sand.u32 %s159, 1
        %s1604 = smul.addr %s1603, 8
        %s1605 = scalar_lea.vmem [#allocation2], %s1604
        // Predicated region
        $region45: #{tpu_custom_call.1} parent=43 // pred_check
          %p1606 = pneg %p169
        $region46: #{tpu_custom_call.1} parent=43 // pred_check_branch
          %1608 = sbr.rel (%p1606) target = $region48
        $region47: #{tpu_custom_call.1} parent=43 // pred_region
          %1610 = vsyncadd %s1602, 0
          %s1611 = smul.addr %s20, 2
          %s1612 = smul.addr %s1611, 4
          %s1613 = scalar_lea.hbm %s6, %s1612
          %s1615 = sshll.u32 %s1605, 4
          %s1616 = int_to_ptr.vmem [resolvable:$true] %s1615
          %s1617 = sshll.u32 %s1613, 4
          %s1618 = int_to_ptr.hbm [resolvable:$true] %s1617
          %1620 = dma.vmem_to_hbm [thread:$0]  %s1616, 128, %s1618, %s1602
        $region48: #{tpu_custom_call.1} parent=43 // pred_fallthru
          _
      $region44: #{tpu_custom_call.1} parent=5 // pred_fallthru
        _
      %p1621 = scmp.le.s32.totalorder 2, %s15
      // Predicated region
      $region49: #{tpu_custom_call.1} parent=5 // pred_check
        %p1622 = pneg %p1621
      $region50: #{tpu_custom_call.1} parent=5 // pred_check_branch
        %1624 = sbr.rel (%p1622) target = $region52
      $region51: #{tpu_custom_call.1} parent=5 // pred_region
        %s1625 = ssub.s32 %s15, 2
        // Predicated region
        $region53: #{tpu_custom_call.1} parent=51 // pred_check
          %p1626 = pneg %p175
        $region54: #{tpu_custom_call.1} parent=51 // pred_check_branch
          %1628 = sbr.rel (%p1626) target = $region56
        $region55: #{tpu_custom_call.1} parent=51 // pred_region
          %s1629 = sand.u32 %s160, 1
          %s1630 = scalar_lea.sflag [#allocation3], %s1629
          %s1631 = sand.u32 %s160, 1
          %s1632 = smul.addr %s1631, 8
          %s1633 = scalar_lea.vmem [#allocation2], %s1632
          %1635 = dma.done %s1630, 128
        $region56: #{tpu_custom_call.1} parent=51 // pred_fallthru
          _
      $region52: #{tpu_custom_call.1} parent=5 // pred_fallthru
        _
    $region6: #{tpu_custom_call.1} parent=1 // loop_footer
      %s19 = sadd.s32 1, %s15
    $region7: #{tpu_custom_call.1} parent=1 // loop_footer_branch
      %14 = sbr.rel target = $region3
    $region8: #{tpu_custom_call.1} parent=1 // loop_exit
      _
    %1636 = vsyncpa [#allocation3], 1
    %s1637 = scalar_lea.sflag [#allocation3], 1
    %1638 = vsyncpa %s1637, 1

</llo_original>
